<compile_context>
chip_gen: v5e
topology: v5e:2x2
jax: 0.10.0
libtpu: 0.0.40
codegen_flags: <defaults>
</compile_context>

<pallas_src>
import functools

import jax
import jax.numpy as jnp
from jax.experimental import pallas as pl
from jax.experimental.pallas import tpu as pltpu


# ---------------------------------------------------------------------------
# helpers
# ---------------------------------------------------------------------------
def _round_up(x, m):
    return (x + m - 1) // m * m


def _choose_tiles(np_n):
    """Row / reduction tiles for the propagation kernel.

    tk prefers 512 (multiple of 256 for the v6e/v7x MXU, multiple of 128 for
    v5e); tm is shrunk until the row grid has >= 2 blocks so the "parallel"
    axis can be sharded across both v7x TensorCores.  Capped at 512 so the
    same config stays well inside v7x's 64 MiB physical VMEM.
    """
    tk = 512 if np_n % 512 == 0 else 256
    tm = 512 if np_n % 512 == 0 else 256
    while tm > 128 and np_n // tm < 2:
        tm //= 2
    return tm, tk


def _vmem_limit(per_step_bytes):
    # ~2x headroom over the double-buffered per-step footprint, clamped to a
    # range that is safe on v7x yet above the small defaults.
    return int(min(48 * 1024 * 1024, max(2 * per_step_bytes, 16 * 1024 * 1024)))


def _pad_rows(x, n_rows):
    pad = n_rows - x.shape[0]
    return x if pad == 0 else jnp.pad(x, ((0, pad), (0, 0)))


def _pad_to(w, shape):
    pr = shape[0] - w.shape[0]
    pc = shape[1] - w.shape[1]
    return w if (pr == 0 and pc == 0) else jnp.pad(w, ((0, pr), (0, pc)))


# ---------------------------------------------------------------------------
# Kernel 1: dual feature transform  S = [X @ W1 | V @ W4]   (bf16 output)
# ---------------------------------------------------------------------------
def _feature_transform_kernel(x_ref, v_ref, wa_ref, wb_ref, s_ref):
    hp = wa_ref.shape[1]
    s1 = jnp.dot(x_ref[...], wa_ref[...], preferred_element_type=jnp.float32)
    s2 = jnp.dot(v_ref[...], wb_ref[...], preferred_element_type=jnp.float32)
    s_ref[:, :hp] = s1.astype(s_ref.dtype)
    s_ref[:, hp:] = s2.astype(s_ref.dtype)


def feature_transform(x, v, wa, wb, *, tm):
    n, f = x.shape
    hp = wa.shape[1]
    per_step = 2 * (2 * tm * f * 2 + 2 * f * hp * 2 + tm * 2 * hp * 2)
    return pl.pallas_call(
        _feature_transform_kernel,
        out_shape=jax.ShapeDtypeStruct((n, 2 * hp), jnp.bfloat16),
        grid_spec=pltpu.PrefetchScalarGridSpec(
            num_scalar_prefetch=0,
            grid=(n // tm,),
            in_specs=[
                pl.BlockSpec((tm, f), lambda i: (i, 0)),
                pl.BlockSpec((tm, f), lambda i: (i, 0)),
                pl.BlockSpec((f, hp), lambda i: (0, 0)),
                pl.BlockSpec((f, hp), lambda i: (0, 0)),
            ],
            out_specs=pl.BlockSpec((tm, 2 * hp), lambda i: (i, 0)),
        ),
        compiler_params=pltpu.CompilerParams(
            dimension_semantics=("parallel",),
            vmem_limit_bytes=_vmem_limit(per_step),
        ),
    )(x, v, wa, wb)


# ---------------------------------------------------------------------------
# Kernel 2: fused dual propagation + cross term + ReLU (block-sparse A_hat)
#   [o1 | o2] = relu( A_hat @ [s1 | s2]  +  D_inv * [s2 | s1] )
# ---------------------------------------------------------------------------
def _dual_prop_kernel(kidx_ref, cnt_ref, a_ref, s_k_ref, s_m_ref, d_ref, o_ref):
    del kidx_ref  # consumed by the index_maps only
    m = pl.program_id(0)
    k = pl.program_id(1)

    @pl.when(k == 0)
    def _init():
        o_ref[...] = jnp.zeros_like(o_ref)

    # Visit only nonzero A_hat blocks; padding steps of the block-CSR repeat
    # the previous block index (no new DMA) and are skipped here.
    @pl.when(k < cnt_ref[m])
    def _accumulate():
        # one lane-dense bf16 MXU pass for both views, f32 accumulation
        # directly into the resident f32 output block (no scratch copy).
        o_ref[...] += jnp.dot(a_ref[...], s_k_ref[...],
                              preferred_element_type=jnp.float32)

    @pl.when(k == pl.num_programs(1) - 1)
    def _finalize():
        hp = o_ref.shape[1] // 2
        d = d_ref[...][:, :1]                        # per-node D_inv column
        s_m = s_m_ref[...].astype(jnp.float32)       # [s1 | s2] for these rows
        o1 = jnp.maximum(o_ref[:, :hp] + d * s_m[:, hp:], 0.0)
        o2 = jnp.maximum(o_ref[:, hp:] + d * s_m[:, :hp], 0.0)
        o_ref[:, :hp] = o1
        o_ref[:, hp:] = o2


def dual_propagate(a_hat, s, d_panel, kidx, cnt, *, tm, tk):
    np_n = a_hat.shape[0]
    w2 = s.shape[1]                  # 2 * Hp (multiple of 256)
    mb = np_n // tm
    max_nnz = kidx.shape[1]
    per_step = 2 * (tm * tk * 2      # A_hat tile (bf16), double-buffered
                    + tk * w2 * 2    # S source panel (bf16)
                    + tm * w2 * 2    # S row panel (bf16)
                    + tm * 128 * 4   # D_inv lane-dense panel (f32)
                    + tm * w2 * 4)   # resident f32 output / accumulator
    return pl.pallas_call(
        _dual_prop_kernel,
        out_shape=jax.ShapeDtypeStruct((np_n, w2), jnp.float32),
        grid_spec=pltpu.PrefetchScalarGridSpec(
            num_scalar_prefetch=2,               # kidx (block-CSR), cnt
            grid=(mb, max_nnz),                  # reduction axis last
            in_specs=[
                # A_hat tile: k walks only the nonzero column blocks of row m
                pl.BlockSpec((tm, tk), lambda m, k, ki, ct: (m, ki[m, k])),
                # matching source rows of the packed [s1 | s2] panel
                pl.BlockSpec((tk, w2), lambda m, k, ki, ct: (ki[m, k], 0)),
                # row-aligned [s1 | s2] panel for the D_inv cross term
                pl.BlockSpec((tm, w2), lambda m, k, ki, ct: (m, 0)),
                # lane-dense D_inv panel (avoids 1-wide masked loads)
                pl.BlockSpec((tm, 128), lambda m, k, ki, ct: (m, 0)),
            ],
            out_specs=pl.BlockSpec((tm, w2), lambda m, k, ki, ct: (m, 0)),
        ),
        compiler_params=pltpu.CompilerParams(
            dimension_semantics=("parallel", "arbitrary"),
            vmem_limit_bytes=_vmem_limit(per_step),
        ),
    )(kidx, cnt, a_hat, s, s, d_panel)


# ---------------------------------------------------------------------------
# Graph preprocessing (plain JAX, hoisted out of the forward pass)
# ---------------------------------------------------------------------------
def build_normalized_adjacency(edge_index, num_nodes, padded_nodes=None):
    """Dense sym-normalized adjacency with self loops: D^-1/2 (A+I) D^-1/2.

    Returns (a_hat [Np,Np] bf16, d_inv [Np,1] f32), zero-padded to `padded_nodes`.
    """
    np_n = padded_nodes if padded_nodes is not None else num_nodes
    src, dst = edge_index[0], edge_index[1]
    a = jnp.zeros((np_n, np_n), jnp.float32)
    a = a.at[src, dst].set(1.0)
    a = a.at[dst, src].set(1.0)                          # undirected
    self_loops = (jnp.arange(np_n) < num_nodes).astype(jnp.float32)
    a = a + jnp.diag(self_loops)                         # self loops on real nodes
    deg = jnp.sum(a, axis=1)
    d_isqrt = jnp.where(deg > 0, jax.lax.rsqrt(deg), 0.0)
    a_hat = a * d_isqrt[:, None] * d_isqrt[None, :]
    # TODO(synk): verify this 1/deg(A+I) matches the reference model's D_inv.
    d_inv = jnp.where(deg > 0, 1.0 / deg, 0.0)[:, None]
    return a_hat.astype(jnp.bfloat16), d_inv.astype(jnp.float32)


def build_block_csr(a_hat, tm, tk):
    """Per m-row-block list of nonzero k-block indices (block-CSR) of A_hat.

    Padding entries repeat the last valid block index so the pipeline issues
    no extra DMA for them; the kernel guards the accumulate with `cnt`.
    """
    np_n = a_hat.shape[0]
    mb, kb = np_n // tm, np_n // tk
    nz = jnp.any(a_hat.reshape(mb, tm, kb, tk) != 0, axis=(1, 3))       # (mb, kb)
    counts = jnp.sum(nz, axis=1).astype(jnp.int32)                       # (mb,)
    order = jnp.argsort((~nz).astype(jnp.int32), axis=1,
                        stable=True).astype(jnp.int32)                   # nz first
    last = jnp.take_along_axis(order, jnp.maximum(counts - 1, 0)[:, None], axis=1)
    in_range = jnp.arange(kb, dtype=jnp.int32)[None, :] < counts[:, None]
    kidx = jnp.where(in_range, order, last)
    max_nnz = max(int(jnp.max(counts)), 1)
    return kidx[:, :max_nnz], counts


def preprocess_graph(edge_index, num_nodes):
    """One-time graph prep: padded A_hat (bf16), its block-CSR, and D_inv."""
    np_n = _round_up(num_nodes, 256)
    tm, tk = _choose_tiles(np_n)
    a_hat, d_inv = build_normalized_adjacency(edge_index, num_nodes, np_n)
    kidx, cnt = build_block_csr(a_hat, tm, tk)
    graph = {"a_hat": a_hat, "kidx": kidx, "cnt": cnt}
    return graph, d_inv[:num_nodes]


def glorot(key, shape):
    fan_in, fan_out = shape
    limit = jnp.sqrt(6.0 / (fan_in + fan_out))
    return jax.random.uniform(key, shape, jnp.float32, -limit, limit)


def init_gcn2_params(key, n_features, n_graphfea, n_hid):
    f_in = n_features + n_graphfea
    ks = jax.random.split(key, 6)
    return {
        "w1": glorot(ks[0], (f_in, n_hid)),
        "w2": glorot(ks[1], (n_hid, n_hid)),
        "w3": glorot(ks[2], (n_hid, n_hid)),
        "w4": glorot(ks[3], (f_in, n_hid)),
        "w5": glorot(ks[4], (n_hid, n_hid)),
        "w6": glorot(ks[5], (n_hid, n_hid)),
    }


# ---------------------------------------------------------------------------
# Forward pass (mirrors GCN2.forward; returns (x1, x2))
# ---------------------------------------------------------------------------
@functools.partial(jax.jit, static_argnames=("num_nodes", "n_hid"))
def gcn2_forward(params, x, view2, d_inv, graph, *, num_nodes, n_hid):
    n, h = num_nodes, n_hid
    a_hat = graph["a_hat"]
    np_n = a_hat.shape[0]
    hp = _round_up(h, 128)                   # per-view width padded to 128 lanes
    f_in = params["w1"].shape[0]
    tm, tk = _choose_tiles(np_n)

    # bf16 inputs / weights (native MXU format, half the HBM bytes); the dots
    # accumulate in f32 inside the kernels.
    x_p = _pad_rows(x.astype(jnp.float32), np_n).astype(jnp.bfloat16)
    v_p = _pad_rows(view2.astype(jnp.float32), np_n).astype(jnp.bfloat16)
    w1 = _pad_to(params["w1"], (f_in, hp)).astype(jnp.bfloat16)
    w4 = _pad_to(params["w4"], (f_in, hp)).astype(jnp.bfloat16)

    d_col = jnp.reshape(d_inv, (-1, 1)).astype(jnp.float32)
    d_panel = jnp.broadcast_to(_pad_rows(d_col, np_n), (np_n, 128))

    # Layer 1 (conv1 / conv4) — the only values GCN2.forward returns.  The
    # reference's layers 2/3 (conv2/5, conv3/6) only feed the dead q/p
    # concatenations and are deleted entirely (no dead MXU / HBM work).
    s1 = feature_transform(x_p, v_p, w1, w4, tm=tm)                # [X@W1 | V@W4]
    o1 = dual_propagate(a_hat, s1, d_panel, graph["kidx"], graph["cnt"],
                        tm=tm, tk=tk)                              # [x1 | x2]

    x1 = o1[:n, :h]
    x2 = o1[:n, hp:hp + h]
    return x1, x2


if __name__ == "__main__":
    key = jax.random.PRNGKey(0)
    k_x, k_v, k_e, k_p = jax.random.split(key, 4)

    num_nodes = 128
    n_features, n_graphfea, n_hid = 16, 16, 32
    f_in = n_features + n_graphfea
    num_edges = 256

    x = jax.random.normal(k_x, (num_nodes, f_in), jnp.float32)
    view2 = jax.random.normal(k_v, (num_nodes, f_in), jnp.float32)
    edge_index = jax.random.randint(k_e, (2, num_edges), 0, num_nodes, jnp.int32)

    params = init_gcn2_params(k_p, n_features, n_graphfea, n_hid)

    # Graph preprocessing built exactly once (hoisted out of the forward).
    graph, d_inv = preprocess_graph(edge_index, num_nodes)

    x1, x2 = gcn2_forward(params, x, view2, d_inv, graph,
                          num_nodes=num_nodes, n_hid=n_hid)
    jax.block_until_ready((x1, x2))

    assert x1.shape == (num_nodes, n_hid) and x2.shape == (num_nodes, n_hid)
    assert bool(jnp.all(jnp.isfinite(x1))) and bool(jnp.all(jnp.isfinite(x2)))
    print("KERNEL_OK")
</pallas_src>

<mosaic_0001>
module attributes {stable_mosaic.version = 11 : i64} {
  func.func @_feature_transform_kernel(%arg0: i32, %arg1: memref<128x32xbf16, #tpu.memory_space<vmem>>, %arg2: memref<128x32xbf16, #tpu.memory_space<vmem>>, %arg3: memref<32x128xbf16, #tpu.memory_space<vmem>>, %arg4: memref<32x128xbf16, #tpu.memory_space<vmem>>, %arg5: memref<128x256xbf16, #tpu.memory_space<vmem>>) attributes {dimension_semantics = [#tpu.dimension_semantics<parallel>], iteration_bounds = array<i64: 2>, scalar_prefetch = 0 : i64, scratch_operands = 0 : i64, tpu.core_type = #tpu.core_type<tc>, window_params = [{transform_indices = @transform_0, window_bounds = array<i64: 128, 32>}, {transform_indices = @transform_1, window_bounds = array<i64: 128, 32>}, {pipeline_mode = #tpu.pipeline_mode<synchronous>, transform_indices = @transform_2, window_bounds = array<i64: 32, 128>}, {pipeline_mode = #tpu.pipeline_mode<synchronous>, transform_indices = @transform_3, window_bounds = array<i64: 32, 128>}, {transform_indices = @transform_4, window_bounds = array<i64: 128, 256>}]} {
    %c0 = arith.constant 0 : index
    %c0_0 = arith.constant 0 : index
    %0 = vector.load %arg1[%c0, %c0_0] : memref<128x32xbf16, #tpu.memory_space<vmem>>, vector<128x32xbf16>
    %c0_1 = arith.constant 0 : index
    %c0_2 = arith.constant 0 : index
    %1 = vector.load %arg3[%c0_1, %c0_2] : memref<32x128xbf16, #tpu.memory_space<vmem>>, vector<32x128xbf16>
    %cst = arith.constant dense<0.000000e+00> : vector<128x128xf32>
    %2 = tpu.matmul %0, %1, %cst {dimension_numbers = #tpu.dot_dimension_numbers<[1], [0], [0], [1], [0, 0, 1, 1], [], []>} : vector<128x32xbf16>, vector<32x128xbf16>, vector<128x128xf32> -> vector<128x128xf32>
    %c0_3 = arith.constant 0 : index
    %c0_4 = arith.constant 0 : index
    %3 = vector.load %arg2[%c0_3, %c0_4] : memref<128x32xbf16, #tpu.memory_space<vmem>>, vector<128x32xbf16>
    %c0_5 = arith.constant 0 : index
    %c0_6 = arith.constant 0 : index
    %4 = vector.load %arg4[%c0_5, %c0_6] : memref<32x128xbf16, #tpu.memory_space<vmem>>, vector<32x128xbf16>
    %cst_7 = arith.constant dense<0.000000e+00> : vector<128x128xf32>
    %5 = tpu.matmul %3, %4, %cst_7 {dimension_numbers = #tpu.dot_dimension_numbers<[1], [0], [0], [1], [0, 0, 1, 1], [], []>} : vector<128x32xbf16>, vector<32x128xbf16>, vector<128x128xf32> -> vector<128x128xf32>
    %6 = arith.truncf %2 : vector<128x128xf32> to vector<128x128xbf16>
    %c0_8 = arith.constant 0 : index
    %c0_9 = arith.constant 0 : index
    %7 = vector.load %arg5[%c0_8, %c0_9] : memref<128x256xbf16, #tpu.memory_space<vmem>>, vector<128x128xbf16>
    tpu.vector_store %arg5[%c0_8, %c0_9], %6 {strides = array<i32>} : memref<128x256xbf16, #tpu.memory_space<vmem>>, vector<128x128xbf16>,
    %8 = arith.truncf %5 : vector<128x128xf32> to vector<128x128xbf16>
    %c0_10 = arith.constant 0 : index
    %c128 = arith.constant 128 : index
    %9 = vector.load %arg5[%c0_10, %c128] : memref<128x256xbf16, #tpu.memory_space<vmem>>, vector<128x128xbf16>
    tpu.vector_store %arg5[%c0_10, %c128], %8 {strides = array<i32>} : memref<128x256xbf16, #tpu.memory_space<vmem>>, vector<128x128xbf16>,
    return
  }
  func.func @transform_0(%arg0: i32) -> (i32, i32) {
    %c0_i32 = arith.constant 0 : i32
    %c0_i32_0 = arith.constant 0 : i32
    return %arg0, %c0_i32 : i32, i32
  }
  func.func @transform_1(%arg0: i32) -> (i32, i32) {
    %c0_i32 = arith.constant 0 : i32
    %c0_i32_0 = arith.constant 0 : i32
    return %arg0, %c0_i32 : i32, i32
  }
  func.func @transform_2(%arg0: i32) -> (i32, i32) {
    %c0_i32 = arith.constant 0 : i32
    %c0_i32_0 = arith.constant 0 : i32
    %c0_i32_1 = arith.constant 0 : i32
    return %c0_i32, %c0_i32_0 : i32, i32
  }
  func.func @transform_3(%arg0: i32) -> (i32, i32) {
    %c0_i32 = arith.constant 0 : i32
    %c0_i32_0 = arith.constant 0 : i32
    %c0_i32_1 = arith.constant 0 : i32
    return %c0_i32, %c0_i32_0 : i32, i32
  }
  func.func @transform_4(%arg0: i32) -> (i32, i32) {
    %c0_i32 = arith.constant 0 : i32
    %c0_i32_0 = arith.constant 0 : i32
    return %arg0, %c0_i32 : i32, i32
  }
}

module attributes {stable_mosaic.version = 11 : i64} {
  func.func @_dual_prop_kernel(%arg0: i32, %arg1: i32, %arg2: memref<2x1xi32, #tpu.memory_space<smem>>, %arg3: memref<2xi32, #tpu.memory_space<smem>>, %arg4: memref<128x256xbf16, #tpu.memory_space<vmem>>, %arg5: memref<256x256xbf16, #tpu.memory_space<vmem>>, %arg6: memref<128x256xbf16, #tpu.memory_space<vmem>>, %arg7: memref<128x128xf32, #tpu.memory_space<vmem>>, %arg8: memref<128x256xf32, #tpu.memory_space<vmem>>) attributes {dimension_semantics = [#tpu.dimension_semantics<parallel>, #tpu.dimension_semantics<arbitrary>], iteration_bounds = array<i64: 2, 1>, scalar_prefetch = 2 : i64, scratch_operands = 0 : i64, tpu.core_type = #tpu.core_type<tc>, window_params = [{transform_indices = @transform_0, window_bounds = array<i64: 128, 256>}, {transform_indices = @transform_1, window_bounds = array<i64: 256, 256>}, {transform_indices = @transform_2, window_bounds = array<i64: 128, 256>}, {transform_indices = @transform_3, window_bounds = array<i64: 128, 128>}, {transform_indices = @transform_4, window_bounds = array<i64: 128, 256>}]} {
    %c0_i32 = arith.constant 0 : i32
    %0 = arith.cmpi eq, %arg1, %c0_i32 : i32
    %1 = arith.extui %0 : i1 to i32
    %c0_i32_0 = arith.constant 0 : i32
    %2 = arith.cmpi ne, %1, %c0_i32_0 : i32
    scf.if %2 {
      %cst = arith.constant 0.000000e+00 : f32
      %11 = vector.broadcast %cst : f32 to vector<128x256xf32>
      %c0 = arith.constant 0 : index
      %c0_4 = arith.constant 0 : index
      %12 = vector.load %arg8[%c0, %c0_4] : memref<128x256xf32, #tpu.memory_space<vmem>>, vector<128x256xf32>
      tpu.vector_store %arg8[%c0, %c0_4], %11 {strides = array<i32>} : memref<128x256xf32, #tpu.memory_space<vmem>>, vector<128x256xf32>,
    } else {
    }
    %3 = arith.index_cast %arg0 : i32 to index
    %4 = memref.load %arg3[%3] : memref<2xi32, #tpu.memory_space<smem>>
    %5 = arith.cmpi slt, %arg1, %4 : i32
    %6 = arith.extui %5 : i1 to i32
    %c0_i32_1 = arith.constant 0 : i32
    %7 = arith.cmpi ne, %6, %c0_i32_1 : i32
    scf.if %7 {
      %c0 = arith.constant 0 : index
      %c0_4 = arith.constant 0 : index
      %11 = vector.load %arg8[%c0, %c0_4] : memref<128x256xf32, #tpu.memory_space<vmem>>, vector<128x256xf32>
      %c0_5 = arith.constant 0 : index
      %c0_6 = arith.constant 0 : index
      %12 = vector.load %arg4[%c0_5, %c0_6] : memref<128x256xbf16, #tpu.memory_space<vmem>>, vector<128x256xbf16>
      %c0_7 = arith.constant 0 : index
      %c0_8 = arith.constant 0 : index
      %13 = vector.load %arg5[%c0_7, %c0_8] : memref<256x256xbf16, #tpu.memory_space<vmem>>, vector<256x256xbf16>
      %cst = arith.constant dense<0.000000e+00> : vector<128x256xf32>
      %14 = tpu.matmul %12, %13, %cst {dimension_numbers = #tpu.dot_dimension_numbers<[1], [0], [0], [1], [0, 0, 1, 1], [], []>} : vector<128x256xbf16>, vector<256x256xbf16>, vector<128x256xf32> -> vector<128x256xf32>
      %15 = arith.addf %11, %14 : vector<128x256xf32>
      %c0_9 = arith.constant 0 : index
      %c0_10 = arith.constant 0 : index
      %16 = vector.load %arg8[%c0_9, %c0_10] : memref<128x256xf32, #tpu.memory_space<vmem>>, vector<128x256xf32>
      tpu.vector_store %arg8[%c0_9, %c0_10], %15 {strides = array<i32>} : memref<128x256xf32, #tpu.memory_space<vmem>>, vector<128x256xf32>,
    } else {
    }
    %c0_i32_2 = arith.constant 0 : i32
    %8 = arith.cmpi eq, %arg1, %c0_i32_2 : i32
    %9 = arith.extui %8 : i1 to i32
    %c0_i32_3 = arith.constant 0 : i32
    %10 = arith.cmpi ne, %9, %c0_i32_3 : i32
    scf.if %10 {
      %c0 = arith.constant 0 : index
      %c0_4 = arith.constant 0 : index
      %11 = vector.load %arg7[%c0, %c0_4] : memref<128x128xf32, #tpu.memory_space<vmem>>, vector<128x128xf32>
      %12 = vector.extract_strided_slice %11 {offsets = [0, 0], sizes = [128, 1], strides = [1, 1]} : vector<128x128xf32> to vector<128x1xf32>
      %c0_5 = arith.constant 0 : index
      %c0_6 = arith.constant 0 : index
      %13 = vector.load %arg6[%c0_5, %c0_6] : memref<128x256xbf16, #tpu.memory_space<vmem>>, vector<128x256xbf16>
      %14 = arith.extf %13 : vector<128x256xbf16> to vector<128x256xf32>
      %c0_7 = arith.constant 0 : index
      %c0_8 = arith.constant 0 : index
      %15 = vector.load %arg8[%c0_7, %c0_8] : memref<128x256xf32, #tpu.memory_space<vmem>>, vector<128x128xf32>
      %16 = vector.extract_strided_slice %14 {offsets = [0, 128], sizes = [128, 128], strides = [1, 1]} : vector<128x256xf32> to vector<128x128xf32>
      %17 = vector.broadcast %12 : vector<128x1xf32> to vector<128x128xf32>
      %18 = arith.mulf %17, %16 : vector<128x128xf32>
      %19 = arith.addf %15, %18 : vector<128x128xf32>
      %cst = arith.constant 0.000000e+00 : f32
      %20 = vector.broadcast %cst : f32 to vector<128x128xf32>
      %21 = arith.maximumf %19, %20 : vector<128x128xf32>
      %c0_9 = arith.constant 0 : index
      %c128 = arith.constant 128 : index
      %22 = vector.load %arg8[%c0_9, %c128] : memref<128x256xf32, #tpu.memory_space<vmem>>, vector<128x128xf32>
      %23 = vector.extract_strided_slice %14 {offsets = [0, 0], sizes = [128, 128], strides = [1, 1]} : vector<128x256xf32> to vector<128x128xf32>
      %24 = vector.broadcast %12 : vector<128x1xf32> to vector<128x128xf32>
      %25 = arith.mulf %24, %23 : vector<128x128xf32>
      %26 = arith.addf %22, %25 : vector<128x128xf32>
      %cst_10 = arith.constant 0.000000e+00 : f32
      %27 = vector.broadcast %cst_10 : f32 to vector<128x128xf32>
      %28 = arith.maximumf %26, %27 : vector<128x128xf32>
      %c0_11 = arith.constant 0 : index
      %c0_12 = arith.constant 0 : index
      %29 = vector.load %arg8[%c0_11, %c0_12] : memref<128x256xf32, #tpu.memory_space<vmem>>, vector<128x128xf32>
      tpu.vector_store %arg8[%c0_11, %c0_12], %21 {strides = array<i32>} : memref<128x256xf32, #tpu.memory_space<vmem>>, vector<128x128xf32>,
      %c0_13 = arith.constant 0 : index
      %c128_14 = arith.constant 128 : index
      %30 = vector.load %arg8[%c0_13, %c128_14] : memref<128x256xf32, #tpu.memory_space<vmem>>, vector<128x128xf32>
      tpu.vector_store %arg8[%c0_13, %c128_14], %28 {strides = array<i32>} : memref<128x256xf32, #tpu.memory_space<vmem>>, vector<128x128xf32>,
    } else {
    }
    return
  }
  func.func @transform_0(%arg0: i32, %arg1: i32, %arg2: memref<2x1xi32, #tpu.memory_space<smem>>, %arg3: memref<2xi32, #tpu.memory_space<smem>>) -> (i32, i32) {
    %0 = arith.index_cast %arg0 : i32 to index
    %1 = arith.index_cast %arg1 : i32 to index
    %2 = memref.load %arg2[%0, %1] : memref<2x1xi32, #tpu.memory_space<smem>>
    %c0_i32 = arith.constant 0 : i32
    return %arg0, %2 : i32, i32
  }
  func.func @transform_1(%arg0: i32, %arg1: i32, %arg2: memref<2x1xi32, #tpu.memory_space<smem>>, %arg3: memref<2xi32, #tpu.memory_space<smem>>) -> (i32, i32) {
    %0 = arith.index_cast %arg0 : i32 to index
    %1 = arith.index_cast %arg1 : i32 to index
    %2 = memref.load %arg2[%0, %1] : memref<2x1xi32, #tpu.memory_space<smem>>
    %c0_i32 = arith.constant 0 : i32
    %c0_i32_0 = arith.constant 0 : i32
    return %2, %c0_i32 : i32, i32
  }
  func.func @transform_2(%arg0: i32, %arg1: i32, %arg2: memref<2x1xi32, #tpu.memory_space<smem>>, %arg3: memref<2xi32, #tpu.memory_space<smem>>) -> (i32, i32) {
    %c0_i32 = arith.constant 0 : i32
    %c0_i32_0 = arith.constant 0 : i32
    return %arg0, %c0_i32 : i32, i32
  }
  func.func @transform_3(%arg0: i32, %arg1: i32, %arg2: memref<2x1xi32, #tpu.memory_space<smem>>, %arg3: memref<2xi32, #tpu.memory_space<smem>>) -> (i32, i32) {
    %c0_i32 = arith.constant 0 : i32
    %c0_i32_0 = arith.constant 0 : i32
    return %arg0, %c0_i32 : i32, i32
  }
  func.func @transform_4(%arg0: i32, %arg1: i32, %arg2: memref<2x1xi32, #tpu.memory_space<smem>>, %arg3: memref<2xi32, #tpu.memory_space<smem>>) -> (i32, i32) {
    %c0_i32 = arith.constant 0 : i32
    %c0_i32_0 = arith.constant 0 : i32
    return %arg0, %c0_i32 : i32, i32
  }
}

</mosaic_0001>

<llo_original>
// kernel: gcn2_forward.2
$region0: #{gcn2_forward.2}
  #allocation0 [shape = 'u32[]', space=smem, size = 0x4, offset = 0x4, fixed_abs, tag = 'smem constant byte address 0x4 - core index']
  #allocation1 [shape = 'u32[72,128]{1,0:T(1,128)}', space=vmem, size = 0x9000, scoped, tag = 'internal scratch']
  %s0 = inlined_call_operand.vmem [shape: bf16[256,32], index: 0, kind: input, shape index: {}]
  %s1 = inlined_call_operand.vmem [shape: bf16[256,32], index: 1, kind: input, shape index: {}]
  %s2 = inlined_call_operand.vmem [shape: bf16[32,128], index: 2, kind: input, shape index: {}]
  %s3 = inlined_call_operand.vmem [shape: bf16[32,128], index: 3, kind: input, shape index: {}]
  %s4 = inlined_call_operand.vmem [shape: bf16[256,256], index: 4, kind: output, shape index: {}]
  %s5 = sld [smem:[#allocation0]]
  $region49: #{gcn2_forward.2} parent=0
    _
  %s7 = ssub.s32 1, %s5
  %s8 = scalar_select 0, %s7, %s5
  loop: start=0, step=1, limit=4
  $region2: #{gcn2_forward.2} parent=0 // loop_pre_header
    _
  $region3: #{gcn2_forward.2} parent=0 // loop_header
    %s10 = sphi 0, %s14
    %p11 = scmp.ge.s32.totalorder %s10, 4
    %s20 = sphi 0, %s22
    %s23 = sphi 0, %s20
    %s24 = sphi 0, %s23
    %s40 = sphi 0, %s24
    %s46 = sphi 0, %s48
    %s49 = sphi 0, %s46
    %s50 = sphi 0, %s49
    %s66 = sphi 0, %s50
    %s70 = sphi 0, %s70
    %s72 = sphi 0, %s70
    %s73 = sphi 0, %s72
    %s87 = sphi 0, %s73
    %s91 = sphi 0, %s91
    %s93 = sphi 0, %s91
    %s94 = sphi 0, %s93
    %s108 = sphi 0, %s94
    %s114 = sphi 0, %s116
    %s117 = sphi 0, %s114
    %s118 = sphi 0, %s117
    %s134 = sphi 0, %s118
  $region4: #{gcn2_forward.2} parent=0 // loop_header_branch
    %13 = sbr.rel (%p11) target = $region8
  $region5: #{gcn2_forward.2} parent=0 // loop_body
    %s15 = ssub.s32 %s10, 1
    %s16 = ssub.s32 %s10, 2
    %s17 = sadd.s32 %s10, 1
    %s18 = ssub.s32 %s10, %s17
    %p19 = scmp.eq.s32.totalorder %s18, 0
    %s21 = sadd.s32 %s20, 1
    %s22 = scalar_select %p19, %s20, %s21
    %p25 = pneg %p19
    %p26 = scmp.eq.s32.totalorder %s10, 1
    %p27 = por %p25, %p26
    %p28 = scmp.ne.s32.totalorder %s20, %s23
    %p29 = scmp.eq.s32.totalorder %s10, 0
    %p30 = por %p28, %p29
    %p31 = scmp.ne.s32.totalorder %s20, %s23
    %p32 = scmp.eq.s32.totalorder %s15, 1
    %p33 = por %p31, %p32
    %p34 = scmp.ne.s32.totalorder %s23, %s24
    %p35 = scmp.eq.s32.totalorder %s15, 0
    %p36 = por %p34, %p35
    %p37 = scmp.ne.s32.totalorder %s23, %s24
    %p38 = scmp.eq.s32.totalorder %s16, 1
    %p39 = por %p37, %p38
    %p41 = scmp.ne.s32.totalorder %s24, %s40
    %p42 = scmp.eq.s32.totalorder %s16, 0
    %p43 = por %p41, %p42
    %s44 = ssub.s32 %s10, %s17
    %p45 = scmp.eq.s32.totalorder %s44, 0
    %s47 = sadd.s32 %s46, 1
    %s48 = scalar_select %p45, %s46, %s47
    %p51 = pneg %p45
    %p52 = scmp.eq.s32.totalorder %s10, 1
    %p53 = por %p51, %p52
    %p54 = scmp.ne.s32.totalorder %s46, %s49
    %p55 = scmp.eq.s32.totalorder %s10, 0
    %p56 = por %p54, %p55
    %p57 = scmp.ne.s32.totalorder %s46, %s49
    %p58 = scmp.eq.s32.totalorder %s15, 1
    %p59 = por %p57, %p58
    %p60 = scmp.ne.s32.totalorder %s49, %s50
    %p61 = scmp.eq.s32.totalorder %s15, 0
    %p62 = por %p60, %p61
    %p63 = scmp.ne.s32.totalorder %s49, %s50
    %p64 = scmp.eq.s32.totalorder %s16, 1
    %p65 = por %p63, %p64
    %p67 = scmp.ne.s32.totalorder %s50, %s66
    %p68 = scmp.eq.s32.totalorder %s16, 0
    %p69 = por %p67, %p68
    %s71 = sadd.s32 %s70, 1
    %p74 = scmp.eq.s32.totalorder %s10, 1
    %p75 = scmp.ne.s32.totalorder %s70, %s72
    %p76 = scmp.eq.s32.totalorder %s10, 0
    %p77 = por %p75, %p76
    %p78 = scmp.ne.s32.totalorder %s70, %s72
    %p79 = scmp.eq.s32.totalorder %s15, 1
    %p80 = por %p78, %p79
    %p81 = scmp.ne.s32.totalorder %s72, %s73
    %p82 = scmp.eq.s32.totalorder %s15, 0
    %p83 = por %p81, %p82
    %p84 = scmp.ne.s32.totalorder %s72, %s73
    %p85 = scmp.eq.s32.totalorder %s16, 1
    %p86 = por %p84, %p85
    %p88 = scmp.ne.s32.totalorder %s73, %s87
    %p89 = scmp.eq.s32.totalorder %s16, 0
    %p90 = por %p88, %p89
    %s92 = sadd.s32 %s91, 1
    %p95 = scmp.eq.s32.totalorder %s10, 1
    %p96 = scmp.ne.s32.totalorder %s91, %s93
    %p97 = scmp.eq.s32.totalorder %s10, 0
    %p98 = por %p96, %p97
    %p99 = scmp.ne.s32.totalorder %s91, %s93
    %p100 = scmp.eq.s32.totalorder %s15, 1
    %p101 = por %p99, %p100
    %p102 = scmp.ne.s32.totalorder %s93, %s94
    %p103 = scmp.eq.s32.totalorder %s15, 0
    %p104 = por %p102, %p103
    %p105 = scmp.ne.s32.totalorder %s93, %s94
    %p106 = scmp.eq.s32.totalorder %s16, 1
    %p107 = por %p105, %p106
    %p109 = scmp.ne.s32.totalorder %s94, %s108
    %p110 = scmp.eq.s32.totalorder %s16, 0
    %p111 = por %p109, %p110
    %s112 = ssub.s32 %s10, %s17
    %p113 = scmp.eq.s32.totalorder %s112, 0
    %s115 = sadd.s32 %s114, 1
    %s116 = scalar_select %p113, %s114, %s115
    %p119 = pneg %p113
    %p120 = scmp.eq.s32.totalorder %s10, 1
    %p121 = por %p119, %p120
    %p122 = scmp.ne.s32.totalorder %s114, %s117
    %p123 = scmp.eq.s32.totalorder %s10, 0
    %p124 = por %p122, %p123
    %p125 = scmp.ne.s32.totalorder %s114, %s117
    %p126 = scmp.eq.s32.totalorder %s15, 1
    %p127 = por %p125, %p126
    %p128 = scmp.ne.s32.totalorder %s117, %s118
    %p129 = scmp.eq.s32.totalorder %s15, 0
    %p130 = por %p128, %p129
    %p131 = scmp.ne.s32.totalorder %s117, %s118
    %p132 = scmp.eq.s32.totalorder %s16, 1
    %p133 = por %p131, %p132
    %p135 = scmp.ne.s32.totalorder %s118, %s134
    %p136 = scmp.eq.s32.totalorder %s16, 0
    %p137 = por %p135, %p136
    %p138 = scmp.le.s32.totalorder 1, %s10
    %p139 = scmp.lt.s32.totalorder %s10, 3
    %p140 = pnand %p138, %p139
    %p141 = pneg %p140
    // Predicated region
    $region9: #{gcn2_forward.2} parent=5 // pred_check
      _
    $region10: #{gcn2_forward.2} parent=5 // pred_check_branch
      %143 = sbr.rel (%p140) target = $region12
    $region11: #{gcn2_forward.2} parent=5 // pred_region
      %s144 = ssub.s32 %s10, 1
      // Predicated region
      $region13: #{gcn2_forward.2} parent=11 // pred_check
        %p145 = pneg %p83
      $region14: #{gcn2_forward.2} parent=11 // pred_check_branch
        %147 = sbr.rel (%p145) target = $region16
      $region15: #{gcn2_forward.2} parent=11 // pred_region
        _
      $region16: #{gcn2_forward.2} parent=11 // pred_fallthru
        _
      // Predicated region
      $region17: #{gcn2_forward.2} parent=11 // pred_check
        %p148 = pneg %p104
      $region18: #{gcn2_forward.2} parent=11 // pred_check_branch
        %150 = sbr.rel (%p148) target = $region20
      $region19: #{gcn2_forward.2} parent=11 // pred_region
        _
      $region20: #{gcn2_forward.2} parent=11 // pred_fallthru
        _
    $region12: #{gcn2_forward.2} parent=5 // pred_fallthru
      _
    %p151 = scmp.lt.s32.totalorder %s10, 2
    // Predicated region
    $region21: #{gcn2_forward.2} parent=5 // pred_check
      %p152 = pneg %p151
    $region22: #{gcn2_forward.2} parent=5 // pred_check_branch
      %154 = sbr.rel (%p152) target = $region24
    $region23: #{gcn2_forward.2} parent=5 // pred_region
      // Predicated region
      $region25: #{gcn2_forward.2} parent=23 // pred_check
        %p155 = pneg %p30
      $region26: #{gcn2_forward.2} parent=23 // pred_check_branch
        %157 = sbr.rel (%p155) target = $region28
      $region27: #{gcn2_forward.2} parent=23 // pred_region
        %s158 = smul.u32 16, %s10
        %p159 = scmp.lt.s32.totalorder %s158, 31
        %s160 = scalar_select %p159, %s158, 31
        %s161 = smul.addr %s160, 4
        %s162 = scalar_lea.vmem %s0, %s161
        %s163 = smul.u32 16, %s10
      $region28: #{gcn2_forward.2} parent=23 // pred_fallthru
        _
      // Predicated region
      $region29: #{gcn2_forward.2} parent=23 // pred_check
        %p164 = pneg %p56
      $region30: #{gcn2_forward.2} parent=23 // pred_check_branch
        %166 = sbr.rel (%p164) target = $region32
      $region31: #{gcn2_forward.2} parent=23 // pred_region
        %s167 = smul.u32 16, %s10
        %p168 = scmp.lt.s32.totalorder %s167, 31
        %s169 = scalar_select %p168, %s167, 31
        %s170 = smul.addr %s169, 4
        %s171 = scalar_lea.vmem %s1, %s170
        %s172 = smul.u32 16, %s10
      $region32: #{gcn2_forward.2} parent=23 // pred_fallthru
        _
    $region24: #{gcn2_forward.2} parent=5 // pred_fallthru
      _
    %p173 = scmp.le.s32.totalorder 1, %s10
    %p174 = scmp.lt.s32.totalorder %s10, 3
    %p175 = pnand %p173, %p174
    %p176 = pneg %p175
    // Predicated region
    $region33: #{gcn2_forward.2} parent=5 // pred_check
      _
    $region34: #{gcn2_forward.2} parent=5 // pred_check_branch
      %178 = sbr.rel (%p175) target = $region36
    $region35: #{gcn2_forward.2} parent=5 // pred_region
      %s179 = ssub.s32 %s10, 1
      %s180 = smul.u32 16, %s15
      %p181 = scmp.lt.s32.totalorder %s180, 31
      %s182 = scalar_select %p181, %s180, 31
      %s183 = smul.addr %s182, 4
      %s184 = scalar_lea.vmem %s0, %s183
      %p185 = pneg %p36
      %p186 = pneg %p33
      %s187 = smul.u32 16, %s15
      %p188 = scmp.lt.s32.totalorder %s187, 31
      %s189 = scalar_select %p188, %s187, 31
      %s190 = smul.addr %s189, 4
      %s191 = scalar_lea.vmem %s1, %s190
      %p192 = pneg %p62
      %p193 = pneg %p59
      %p194 = pneg %p83
      %p195 = pneg %p80
      %p196 = pneg %p104
      %p197 = pneg %p101
      %p198 = pneg %p130
      %p199 = pneg %p127
      %s200 = smul.u32 16, %s15
      %p201 = scmp.lt.s32.totalorder %s200, 31
      %s202 = scalar_select %p201, %s200, 31
      %s203 = smul.addr %s202, 2
      %s204 = smul.addr %s203, 4
      %s205 = scalar_lea.vmem %s4, %s204
      %s206 = smul.u32 16, %s15
      %p207 = scmp.lt.s32.totalorder %s206, 31
      %s208 = scalar_select %p207, %s206, 31
      %s209 = smul.addr %s208, 4
      %s210 = scalar_lea.vmem %s0, %s209
      %s211 = smul.u32 16, %s15
      %s212 = smul.u32 16, %s15
      %p213 = scmp.lt.s32.totalorder %s212, 31
      %s214 = scalar_select %p213, %s212, 31
      %s215 = smul.addr %s214, 4
      %s216 = scalar_lea.vmem %s1, %s215
      %s217 = smul.u32 16, %s15
      %s218 = smul.u32 16, %s15
      %p219 = scmp.lt.s32.totalorder %s218, 31
      %s220 = scalar_select %p219, %s218, 31
      %s221 = smul.addr %s220, 2
      %s222 = smul.addr %s221, 4
      %s223 = scalar_lea.vmem %s4, %s222
      %s224 = smul.u32 16, %s15
      %v226 = vld [vmem:[%s210] sm:$0xf]
      %v227 = vld [vmem:[%s210 + $0x4] sm:$0xf]
      %v228 = vld [vmem:[%s210 + $0x8] sm:$0xf]
      %v229 = vld [vmem:[%s210 + $0xc] sm:$0xf]
      %v230 = vld [vmem:[%s210 + $0x10] sm:$0xf]
      %v231 = vld [vmem:[%s210 + $0x14] sm:$0xf]
      %v232 = vld [vmem:[%s210 + $0x18] sm:$0xf]
      %v233 = vld [vmem:[%s210 + $0x1c] sm:$0xf]
      %v234 = vld [vmem:[%s210 + $0x20] sm:$0xf]
      %v235 = vld [vmem:[%s210 + $0x24] sm:$0xf]
      %v236 = vld [vmem:[%s210 + $0x28] sm:$0xf]
      %v237 = vld [vmem:[%s210 + $0x2c] sm:$0xf]
      %v238 = vld [vmem:[%s210 + $0x30] sm:$0xf]
      %v239 = vld [vmem:[%s210 + $0x34] sm:$0xf]
      %v240 = vld [vmem:[%s210 + $0x38] sm:$0xf]
      %v241 = vld [vmem:[%s210 + $0x3c] sm:$0xf]
      %v242 = vld [vmem:[%s2] sm:$0xf]
      %v243 = vld [vmem:[%s2 + $0x4] sm:$0xf]
      %v244 = vld [vmem:[%s2 + $0x8] sm:$0xf]
      %v245 = vld [vmem:[%s2 + $0xc] sm:$0xf]
      %v262 = vunpack.c.l.b16 %v226
      %v263 = vunpack.c.l.b16 %v227
      %v264 = vunpack.c.l.b16 %v228
      %v265 = vunpack.c.l.b16 %v229
      %v266 = vunpack.c.l.b16 %v230
      %v267 = vunpack.c.l.b16 %v231
      %v268 = vunpack.c.l.b16 %v232
      %v269 = vunpack.c.l.b16 %v233
      %v270 = vunpack.c.l.b16 %v234
      %v271 = vunpack.c.l.b16 %v235
      %v272 = vunpack.c.l.b16 %v236
      %v273 = vunpack.c.l.b16 %v237
      %v274 = vunpack.c.l.b16 %v238
      %v275 = vunpack.c.l.b16 %v239
      %v276 = vunpack.c.l.b16 %v240
      %v277 = vunpack.c.l.b16 %v241
      %v278 = vpack.c.b16 %v263, %v262
      %v279 = vpack.c.b16 %v265, %v264
      %v280 = vpack.c.b16 %v267, %v266
      %v281 = vpack.c.b16 %v269, %v268
      %v282 = vpack.c.b16 %v271, %v270
      %v283 = vpack.c.b16 %v273, %v272
      %v284 = vpack.c.b16 %v275, %v274
      %v285 = vpack.c.b16 %v277, %v276
      %v290 = vunpack.c.l.b16 %v242
      %v291 = vunpack.c.l.b16 %v243
      %v292 = vunpack.c.l.b16 %v244
      %v293 = vunpack.c.l.b16 %v245
      %v294 = vpack.c.b16 %v291, %v290
      %v295 = vpack.c.b16 %v293, %v292
      %vm298 = vcmask 261120
      %v300 = vsel %vm298, %v278, 0
      %v303 = vsel %vm298, %v279, 0
      %v306 = vsel %vm298, %v280, 0
      %v309 = vsel %vm298, %v281, 0
      %v312 = vsel %vm298, %v282, 0
      %v315 = vsel %vm298, %v283, 0
      %v318 = vsel %vm298, %v284, 0
      %v321 = vsel %vm298, %v285, 0
      %323 = vmatpush.bf16.msra.mxu0 0
      %324 = vmatpush.bf16.msra.mxu0 0
      %325 = vmatpush.bf16.msra.mxu0 0
      %326 = vmatpush.bf16.msra.mxu0 0
      %327 = vmatpush.bf16.msra.mxu0 0
      %328 = vmatpush.bf16.msra.mxu0 0
      %329 = vmatpush.bf16.msra.mxu0 %v295
      %330 = vmatpush.bf16.msra.mxu0 %v294
      %331 = vmatmul.bf16.gmra.mxu0 %v300
      %v332 = vpop.f32.mrf.mxu0
      %v333 = vadd.f32 0.0, %v332
      %v334 = vpop.f32.mrf.mxu0
      %v335 = vadd.f32 0.0, %v334
      %336 = vmatmul.bf16.gmra.mxu0 %v303
      %v337 = vpop.f32.mrf.mxu0
      %v338 = vadd.f32 0.0, %v337
      %v339 = vpop.f32.mrf.mxu0
      %v340 = vadd.f32 0.0, %v339
      %341 = vmatmul.bf16.gmra.mxu0 %v306
      %v342 = vpop.f32.mrf.mxu0
      %v343 = vadd.f32 0.0, %v342
      %v344 = vpop.f32.mrf.mxu0
      %v345 = vadd.f32 0.0, %v344
      %346 = vmatmul.bf16.gmra.mxu0 %v309
      %v347 = vpop.f32.mrf.mxu0
      %v348 = vadd.f32 0.0, %v347
      %v349 = vpop.f32.mrf.mxu0
      %v350 = vadd.f32 0.0, %v349
      %351 = vmatmul.bf16.gmra.mxu0 %v312
      %v352 = vpop.f32.mrf.mxu0
      %v353 = vadd.f32 0.0, %v352
      %v354 = vpop.f32.mrf.mxu0
      %v355 = vadd.f32 0.0, %v354
      %356 = vmatmul.bf16.gmra.mxu0 %v315
      %v357 = vpop.f32.mrf.mxu0
      %v358 = vadd.f32 0.0, %v357
      %v359 = vpop.f32.mrf.mxu0
      %v360 = vadd.f32 0.0, %v359
      %361 = vmatmul.bf16.gmra.mxu0 %v318
      %v362 = vpop.f32.mrf.mxu0
      %v363 = vadd.f32 0.0, %v362
      %v364 = vpop.f32.mrf.mxu0
      %v365 = vadd.f32 0.0, %v364
      %366 = vmatmul.bf16.gmra.mxu0 %v321
      %v367 = vpop.f32.mrf.mxu0
      %v368 = vadd.f32 0.0, %v367
      %v369 = vpop.f32.mrf.mxu0
      %v370 = vadd.f32 0.0, %v369
      %371 = vdwg.mxu0
      %v372 = vld [vmem:[%s216] sm:$0xf]
      %v373 = vld [vmem:[%s216 + $0x4] sm:$0xf]
      %v374 = vld [vmem:[%s216 + $0x8] sm:$0xf]
      %v375 = vld [vmem:[%s216 + $0xc] sm:$0xf]
      %v376 = vld [vmem:[%s216 + $0x10] sm:$0xf]
      %v377 = vld [vmem:[%s216 + $0x14] sm:$0xf]
      %v378 = vld [vmem:[%s216 + $0x18] sm:$0xf]
      %v379 = vld [vmem:[%s216 + $0x1c] sm:$0xf]
      %v380 = vld [vmem:[%s216 + $0x20] sm:$0xf]
      %v381 = vld [vmem:[%s216 + $0x24] sm:$0xf]
      %v382 = vld [vmem:[%s216 + $0x28] sm:$0xf]
      %v383 = vld [vmem:[%s216 + $0x2c] sm:$0xf]
      %v384 = vld [vmem:[%s216 + $0x30] sm:$0xf]
      %v385 = vld [vmem:[%s216 + $0x34] sm:$0xf]
      %v386 = vld [vmem:[%s216 + $0x38] sm:$0xf]
      %v387 = vld [vmem:[%s216 + $0x3c] sm:$0xf]
      %v388 = vld [vmem:[%s3] sm:$0xf]
      %v389 = vld [vmem:[%s3 + $0x4] sm:$0xf]
      %v390 = vld [vmem:[%s3 + $0x8] sm:$0xf]
      %v391 = vld [vmem:[%s3 + $0xc] sm:$0xf]
      %v408 = vunpack.c.l.b16 %v372
      %v409 = vunpack.c.l.b16 %v373
      %v410 = vunpack.c.l.b16 %v374
      %v411 = vunpack.c.l.b16 %v375
      %v412 = vunpack.c.l.b16 %v376
      %v413 = vunpack.c.l.b16 %v377
      %v414 = vunpack.c.l.b16 %v378
      %v415 = vunpack.c.l.b16 %v379
      %v416 = vunpack.c.l.b16 %v380
      %v417 = vunpack.c.l.b16 %v381
      %v418 = vunpack.c.l.b16 %v382
      %v419 = vunpack.c.l.b16 %v383
      %v420 = vunpack.c.l.b16 %v384
      %v421 = vunpack.c.l.b16 %v385
      %v422 = vunpack.c.l.b16 %v386
      %v423 = vunpack.c.l.b16 %v387
      %v424 = vpack.c.b16 %v409, %v408
      %v425 = vpack.c.b16 %v411, %v410
      %v426 = vpack.c.b16 %v413, %v412
      %v427 = vpack.c.b16 %v415, %v414
      %v428 = vpack.c.b16 %v417, %v416
      %v429 = vpack.c.b16 %v419, %v418
      %v430 = vpack.c.b16 %v421, %v420
      %v431 = vpack.c.b16 %v423, %v422
      %v436 = vunpack.c.l.b16 %v388
      %v437 = vunpack.c.l.b16 %v389
      %v438 = vunpack.c.l.b16 %v390
      %v439 = vunpack.c.l.b16 %v391
      %v440 = vpack.c.b16 %v437, %v436
      %v441 = vpack.c.b16 %v439, %v438
      %v445 = vsel %vm298, %v424, 0
      %v448 = vsel %vm298, %v425, 0
      %v451 = vsel %vm298, %v426, 0
      %v454 = vsel %vm298, %v427, 0
      %v457 = vsel %vm298, %v428, 0
      %v460 = vsel %vm298, %v429, 0
      %v463 = vsel %vm298, %v430, 0
      %v466 = vsel %vm298, %v431, 0
      %468 = vmatpush.bf16.msra.mxu0 0
      %469 = vmatpush.bf16.msra.mxu0 0
      %470 = vmatpush.bf16.msra.mxu0 0
      %471 = vmatpush.bf16.msra.mxu0 0
      %472 = vmatpush.bf16.msra.mxu0 0
      %473 = vmatpush.bf16.msra.mxu0 0
      %474 = vmatpush.bf16.msra.mxu0 %v441
      %475 = vmatpush.bf16.msra.mxu0 %v440
      %476 = vmatmul.bf16.gmra.mxu0 %v445
      %v477 = vpop.f32.mrf.mxu0
      %v478 = vadd.f32 0.0, %v477
      %v479 = vpop.f32.mrf.mxu0
      %v480 = vadd.f32 0.0, %v479
      %481 = vmatmul.bf16.gmra.mxu0 %v448
      %v482 = vpop.f32.mrf.mxu0
      %v483 = vadd.f32 0.0, %v482
      %v484 = vpop.f32.mrf.mxu0
      %v485 = vadd.f32 0.0, %v484
      %486 = vmatmul.bf16.gmra.mxu0 %v451
      %v487 = vpop.f32.mrf.mxu0
      %v488 = vadd.f32 0.0, %v487
      %v489 = vpop.f32.mrf.mxu0
      %v490 = vadd.f32 0.0, %v489
      %491 = vmatmul.bf16.gmra.mxu0 %v454
      %v492 = vpop.f32.mrf.mxu0
      %v493 = vadd.f32 0.0, %v492
      %v494 = vpop.f32.mrf.mxu0
      %v495 = vadd.f32 0.0, %v494
      %496 = vmatmul.bf16.gmra.mxu0 %v457
      %v497 = vpop.f32.mrf.mxu0
      %v498 = vadd.f32 0.0, %v497
      %v499 = vpop.f32.mrf.mxu0
      %v500 = vadd.f32 0.0, %v499
      %501 = vmatmul.bf16.gmra.mxu0 %v460
      %v502 = vpop.f32.mrf.mxu0
      %v503 = vadd.f32 0.0, %v502
      %v504 = vpop.f32.mrf.mxu0
      %v505 = vadd.f32 0.0, %v504
      %506 = vmatmul.bf16.gmra.mxu0 %v463
      %v507 = vpop.f32.mrf.mxu0
      %v508 = vadd.f32 0.0, %v507
      %v509 = vpop.f32.mrf.mxu0
      %v510 = vadd.f32 0.0, %v509
      %511 = vmatmul.bf16.gmra.mxu0 %v466
      %v512 = vpop.f32.mrf.mxu0
      %v513 = vadd.f32 0.0, %v512
      %v514 = vpop.f32.mrf.mxu0
      %v515 = vadd.f32 0.0, %v514
      %516 = vdwg.mxu0
      %v517 = vpack.c.bf16 %v333, %v333
      %v518 = vpack.c.bf16 %v335, %v335
      %v519 = vpack.c.bf16 %v338, %v338
      %v520 = vpack.c.bf16 %v340, %v340
      %v521 = vpack.c.bf16 %v343, %v343
      %v522 = vpack.c.bf16 %v345, %v345
      %v523 = vpack.c.bf16 %v348, %v348
      %v524 = vpack.c.bf16 %v350, %v350
      %v525 = vpack.c.bf16 %v353, %v353
      %v526 = vpack.c.bf16 %v355, %v355
      %v527 = vpack.c.bf16 %v358, %v358
      %v528 = vpack.c.bf16 %v360, %v360
      %v529 = vpack.c.bf16 %v363, %v363
      %v530 = vpack.c.bf16 %v365, %v365
      %v531 = vpack.c.bf16 %v368, %v368
      %v532 = vpack.c.bf16 %v370, %v370
      %533 = vst [vmem:[%s223] sm:$0xf] %v517
      %534 = vst [vmem:[%s223 + $0x8] sm:$0xf] %v518
      %535 = vst [vmem:[%s223 + $0x10] sm:$0xf] %v519
      %536 = vst [vmem:[%s223 + $0x18] sm:$0xf] %v520
      %537 = vst [vmem:[%s223 + $0x20] sm:$0xf] %v521
      %538 = vst [vmem:[%s223 + $0x28] sm:$0xf] %v522
      %539 = vst [vmem:[%s223 + $0x30] sm:$0xf] %v523
      %540 = vst [vmem:[%s223 + $0x38] sm:$0xf] %v524
      %541 = vst [vmem:[%s223 + $0x40] sm:$0xf] %v525
      %542 = vst [vmem:[%s223 + $0x48] sm:$0xf] %v526
      %543 = vst [vmem:[%s223 + $0x50] sm:$0xf] %v527
      %544 = vst [vmem:[%s223 + $0x58] sm:$0xf] %v528
      %545 = vst [vmem:[%s223 + $0x60] sm:$0xf] %v529
      %546 = vst [vmem:[%s223 + $0x68] sm:$0xf] %v530
      %547 = vst [vmem:[%s223 + $0x70] sm:$0xf] %v531
      %548 = vst [vmem:[%s223 + $0x78] sm:$0xf] %v532
      %v549 = vpack.c.bf16 %v478, %v478
      %v550 = vpack.c.bf16 %v480, %v480
      %v551 = vpack.c.bf16 %v483, %v483
      %v552 = vpack.c.bf16 %v485, %v485
      %v553 = vpack.c.bf16 %v488, %v488
      %v554 = vpack.c.bf16 %v490, %v490
      %v555 = vpack.c.bf16 %v493, %v493
      %v556 = vpack.c.bf16 %v495, %v495
      %v557 = vpack.c.bf16 %v498, %v498
      %v558 = vpack.c.bf16 %v500, %v500
      %v559 = vpack.c.bf16 %v503, %v503
      %v560 = vpack.c.bf16 %v505, %v505
      %v561 = vpack.c.bf16 %v508, %v508
      %v562 = vpack.c.bf16 %v510, %v510
      %v563 = vpack.c.bf16 %v513, %v513
      %v564 = vpack.c.bf16 %v515, %v515
      %565 = vst [vmem:[%s223 + $0x4] sm:$0xf] %v549
      %566 = vst [vmem:[%s223 + $0xc] sm:$0xf] %v550
      %567 = vst [vmem:[%s223 + $0x14] sm:$0xf] %v551
      %568 = vst [vmem:[%s223 + $0x1c] sm:$0xf] %v552
      %569 = vst [vmem:[%s223 + $0x24] sm:$0xf] %v553
      %570 = vst [vmem:[%s223 + $0x2c] sm:$0xf] %v554
      %571 = vst [vmem:[%s223 + $0x34] sm:$0xf] %v555
      %572 = vst [vmem:[%s223 + $0x3c] sm:$0xf] %v556
      %573 = vst [vmem:[%s223 + $0x44] sm:$0xf] %v557
      %574 = vst [vmem:[%s223 + $0x4c] sm:$0xf] %v558
      %575 = vst [vmem:[%s223 + $0x54] sm:$0xf] %v559
      %576 = vst [vmem:[%s223 + $0x5c] sm:$0xf] %v560
      %577 = vst [vmem:[%s223 + $0x64] sm:$0xf] %v561
      %578 = vst [vmem:[%s223 + $0x6c] sm:$0xf] %v562
      %579 = vst [vmem:[%s223 + $0x74] sm:$0xf] %v563
      %580 = vst [vmem:[%s223 + $0x7c] sm:$0xf] %v564
      %s581 = smul.u32 16, %s15
      %p582 = scmp.lt.s32.totalorder %s581, 31
      %s583 = scalar_select %p582, %s581, 31
      %s584 = smul.addr %s583, 2
      %s585 = smul.addr %s584, 4
      %s586 = scalar_lea.vmem %s4, %s585
      // Predicated region
      $region37: #{gcn2_forward.2} parent=35 // pred_check
        %p587 = pneg %p127
      $region38: #{gcn2_forward.2} parent=35 // pred_check_branch
        %589 = sbr.rel (%p587) target = $region40
      $region39: #{gcn2_forward.2} parent=35 // pred_region
        %s590 = smul.u32 16, %s15
      $region40: #{gcn2_forward.2} parent=35 // pred_fallthru
        _
    $region36: #{gcn2_forward.2} parent=5 // pred_fallthru
      _
    %p591 = scmp.le.s32.totalorder 2, %s10
    // Predicated region
    $region41: #{gcn2_forward.2} parent=5 // pred_check
      %p592 = pneg %p591
    $region42: #{gcn2_forward.2} parent=5 // pred_check_branch
      %594 = sbr.rel (%p592) target = $region44
    $region43: #{gcn2_forward.2} parent=5 // pred_region
      %s595 = ssub.s32 %s10, 2
      // Predicated region
      $region45: #{gcn2_forward.2} parent=43 // pred_check
        %p596 = pneg %p133
      $region46: #{gcn2_forward.2} parent=43 // pred_check_branch
        %598 = sbr.rel (%p596) target = $region48
      $region47: #{gcn2_forward.2} parent=43 // pred_region
        %s599 = smul.u32 16, %s16
        %p600 = scmp.lt.s32.totalorder %s599, 31
        %s601 = scalar_select %p600, %s599, 31
        %s602 = smul.addr %s601, 2
        %s603 = smul.addr %s602, 4
        %s604 = scalar_lea.vmem %s4, %s603
      $region48: #{gcn2_forward.2} parent=43 // pred_fallthru
        _
    $region44: #{gcn2_forward.2} parent=5 // pred_fallthru
      _
  $region6: #{gcn2_forward.2} parent=0 // loop_footer
    %s14 = sadd.s32 1, %s10
  $region7: #{gcn2_forward.2} parent=0 // loop_footer_branch
    %9 = sbr.rel target = $region3
  $region8: #{gcn2_forward.2} parent=0 // loop_exit
    _

// kernel: gcn2_forward.3
$region0: #{gcn2_forward.3}
  #allocation0 [shape = 'u32[]', space=smem, size = 0x4, offset = 0x4, fixed_abs, tag = 'smem constant byte address 0x4 - core index']
  #allocation1 [shape = 'u32[72,128]{1,0:T(1,128)}', space=vmem, size = 0x9000, scoped, tag = 'internal scratch']
  #allocation2 [shape = 's32[1]{0}', space=sflag, size = 0x4, scoped, tag = 'scoped memory for gcn2_forward.3']
  #allocation3 [shape = 'u8[1024]{0}', space=smem, size = 0x400, scoped, tag = 'prefetched SMEM operand 0']
  #allocation4 [shape = 'u8[512]{0}', space=smem, size = 0x200, scoped, tag = 'prefetched SMEM operand 1']
  %s0 = inlined_call_operand.vmem [shape: s32[2,1], index: 0, kind: input, shape index: {}]
  %s1 = inlined_call_operand.vmem [shape: s32[2], index: 1, kind: input, shape index: {}]
  %s2 = inlined_call_operand.vmem [shape: bf16[256,256], index: 2, kind: input, shape index: {}]
  %s3 = inlined_call_operand.vmem [shape: bf16[256,256], index: 3, kind: input, shape index: {}, may-alias: {3,4}]
  %s4 = inlined_call_operand.vmem [shape: bf16[256,256], index: 4, kind: input, shape index: {}, may-alias: {3,4}]
  %s5 = inlined_call_operand.vmem [shape: f32[256,128], index: 5, kind: input, shape index: {}]
  %s6 = inlined_call_operand.vmem [shape: f32[256,256], index: 6, kind: output, shape index: {}]
  %s7 = sld [smem:[#allocation0]]
  $region61: #{gcn2_forward.3} parent=0
    _
  %s9 = ssub.s32 1, %s7
  %s10 = scalar_select 0, %s9, %s7
  %s12 = sshll.u32 %s0, 4
  %s13 = int_to_ptr.vmem [resolvable:$true] %s12
  %15 = dma.vmem_to_smem %s13, 32, [#allocation3], [#allocation2]
  %s17 = sshll.u32 %s1, 4
  %s18 = int_to_ptr.vmem [resolvable:$true] %s17
  %20 = dma.vmem_to_smem %s18, 16, [#allocation4], [#allocation2]
  %22 = dma.done [#allocation2], 48
  %23 = sfence
  loop: start=0, step=1, limit=4
  $region2: #{gcn2_forward.3} parent=0 // loop_pre_header
    _
  $region3: #{gcn2_forward.3} parent=0 // loop_header
    %s25 = sphi 0, %s29
    %p26 = scmp.ge.s32.totalorder %s25, 4
    %s32 = sphi 0, %s44
    %s33 = sphi 0, %s40
    %s34 = sphi 0, %s32
    %s35 = sphi 0, %s33
    %s36 = sphi 0, %s34
    %s37 = sphi 0, %s35
    %s65 = sphi 0, %s67
    %s68 = sphi 0, %s65
    %s69 = sphi 0, %s68
    %s85 = sphi 0, %s69
    %s107 = sphi 0, %s109
    %s110 = sphi 0, %s107
    %s111 = sphi 0, %s110
    %s127 = sphi 0, %s111
    %s133 = sphi 0, %s135
    %s136 = sphi 0, %s133
    %s137 = sphi 0, %s136
    %s153 = sphi 0, %s137
    %s159 = sphi 0, %s161
    %s162 = sphi 0, %s159
    %s163 = sphi 0, %s162
    %s179 = sphi 0, %s163
    %s185 = sphi 0, %s187
    %s188 = sphi 0, %s185
    %s189 = sphi 0, %s188
    %s205 = sphi 0, %s189
  $region4: #{gcn2_forward.3} parent=0 // loop_header_branch
    %28 = sbr.rel (%p26) target = $region8
  $region5: #{gcn2_forward.3} parent=0 // loop_body
    %s30 = ssub.s32 %s25, 1
    %s31 = ssub.s32 %s25, 2
    %s38 = sadd.s32 1, %s33
    %p39 = scmp.ge.s32.totalorder %s38, 1
    %s40 = scalar_select %p39, 0, %s38
    %s41 = sadd.s32 1, %s32
    %s42 = scalar_select %p39, %s41, %s32
    %p43 = scmp.ge.s32.totalorder %s42, 2
    %s44 = scalar_select %p43, 0, %s42
    %s45 = sshra.s32 %s33, 7
    %s46 = sand.u32 %s33, 127
    %s47 = sadd.s32 %s45, %s32
    %s48 = smul.u32 %s47, 128
    %s49 = sshra.s32 %s33, 7
    %s50 = sand.u32 %s33, 127
    %s51 = sadd.s32 %s48, %s50
    %s52 = sld [smem:[#allocation3 + %s51]]
    %s53 = sshra.s32 %s40, 7
    %s54 = sand.u32 %s40, 127
    %s55 = sadd.s32 %s53, %s44
    %s56 = smul.u32 %s55, 128
    %s57 = sshra.s32 %s40, 7
    %s58 = sand.u32 %s40, 127
    %s59 = sadd.s32 %s56, %s58
    %s60 = sld [smem:[#allocation3 + %s59]]
    %s61 = ssub.s32 %s32, %s44
    %s62 = ssub.s32 %s52, %s60
    %s63 = sor.u32 %s61, %s62
    %p64 = scmp.eq.s32.totalorder %s63, 0
    %s66 = sadd.s32 %s65, 1
    %s67 = scalar_select %p64, %s65, %s66
    %p70 = pneg %p64
    %p71 = scmp.eq.s32.totalorder %s25, 1
    %p72 = por %p70, %p71
    %p73 = scmp.ne.s32.totalorder %s65, %s68
    %p74 = scmp.eq.s32.totalorder %s25, 0
    %p75 = por %p73, %p74
    %p76 = scmp.ne.s32.totalorder %s65, %s68
    %p77 = scmp.eq.s32.totalorder %s30, 1
    %p78 = por %p76, %p77
    %p79 = scmp.ne.s32.totalorder %s68, %s69
    %p80 = scmp.eq.s32.totalorder %s30, 0
    %p81 = por %p79, %p80
    %p82 = scmp.ne.s32.totalorder %s68, %s69
    %p83 = scmp.eq.s32.totalorder %s31, 1
    %p84 = por %p82, %p83
    %p86 = scmp.ne.s32.totalorder %s69, %s85
    %p87 = scmp.eq.s32.totalorder %s31, 0
    %p88 = por %p86, %p87
    %s89 = sshra.s32 %s33, 7
    %s90 = sand.u32 %s33, 127
    %s91 = sadd.s32 %s89, %s32
    %s92 = smul.u32 %s91, 128
    %s93 = sshra.s32 %s33, 7
    %s94 = sand.u32 %s33, 127
    %s95 = sadd.s32 %s92, %s94
    %s96 = sld [smem:[#allocation3 + %s95]]
    %s97 = sshra.s32 %s40, 7
    %s98 = sand.u32 %s40, 127
    %s99 = sadd.s32 %s97, %s44
    %s100 = smul.u32 %s99, 128
    %s101 = sshra.s32 %s40, 7
    %s102 = sand.u32 %s40, 127
    %s103 = sadd.s32 %s100, %s102
    %s104 = sld [smem:[#allocation3 + %s103]]
    %s105 = ssub.s32 %s96, %s104
    %p106 = scmp.eq.s32.totalorder %s105, 0
    %s108 = sadd.s32 %s107, 1
    %s109 = scalar_select %p106, %s107, %s108
    %p112 = pneg %p106
    %p113 = scmp.eq.s32.totalorder %s25, 1
    %p114 = por %p112, %p113
    %p115 = scmp.ne.s32.totalorder %s107, %s110
    %p116 = scmp.eq.s32.totalorder %s25, 0
    %p117 = por %p115, %p116
    %p118 = scmp.ne.s32.totalorder %s107, %s110
    %p119 = scmp.eq.s32.totalorder %s30, 1
    %p120 = por %p118, %p119
    %p121 = scmp.ne.s32.totalorder %s110, %s111
    %p122 = scmp.eq.s32.totalorder %s30, 0
    %p123 = por %p121, %p122
    %p124 = scmp.ne.s32.totalorder %s110, %s111
    %p125 = scmp.eq.s32.totalorder %s31, 1
    %p126 = por %p124, %p125
    %p128 = scmp.ne.s32.totalorder %s111, %s127
    %p129 = scmp.eq.s32.totalorder %s31, 0
    %p130 = por %p128, %p129
    %s131 = ssub.s32 %s32, %s44
    %p132 = scmp.eq.s32.totalorder %s131, 0
    %s134 = sadd.s32 %s133, 1
    %s135 = scalar_select %p132, %s133, %s134
    %p138 = pneg %p132
    %p139 = scmp.eq.s32.totalorder %s25, 1
    %p140 = por %p138, %p139
    %p141 = scmp.ne.s32.totalorder %s133, %s136
    %p142 = scmp.eq.s32.totalorder %s25, 0
    %p143 = por %p141, %p142
    %p144 = scmp.ne.s32.totalorder %s133, %s136
    %p145 = scmp.eq.s32.totalorder %s30, 1
    %p146 = por %p144, %p145
    %p147 = scmp.ne.s32.totalorder %s136, %s137
    %p148 = scmp.eq.s32.totalorder %s30, 0
    %p149 = por %p147, %p148
    %p150 = scmp.ne.s32.totalorder %s136, %s137
    %p151 = scmp.eq.s32.totalorder %s31, 1
    %p152 = por %p150, %p151
    %p154 = scmp.ne.s32.totalorder %s137, %s153
    %p155 = scmp.eq.s32.totalorder %s31, 0
    %p156 = por %p154, %p155
    %s157 = ssub.s32 %s32, %s44
    %p158 = scmp.eq.s32.totalorder %s157, 0
    %s160 = sadd.s32 %s159, 1
    %s161 = scalar_select %p158, %s159, %s160
    %p164 = pneg %p158
    %p165 = scmp.eq.s32.totalorder %s25, 1
    %p166 = por %p164, %p165
    %p167 = scmp.ne.s32.totalorder %s159, %s162
    %p168 = scmp.eq.s32.totalorder %s25, 0
    %p169 = por %p167, %p168
    %p170 = scmp.ne.s32.totalorder %s159, %s162
    %p171 = scmp.eq.s32.totalorder %s30, 1
    %p172 = por %p170, %p171
    %p173 = scmp.ne.s32.totalorder %s162, %s163
    %p174 = scmp.eq.s32.totalorder %s30, 0
    %p175 = por %p173, %p174
    %p176 = scmp.ne.s32.totalorder %s162, %s163
    %p177 = scmp.eq.s32.totalorder %s31, 1
    %p178 = por %p176, %p177
    %p180 = scmp.ne.s32.totalorder %s163, %s179
    %p181 = scmp.eq.s32.totalorder %s31, 0
    %p182 = por %p180, %p181
    %s183 = ssub.s32 %s32, %s44
    %p184 = scmp.eq.s32.totalorder %s183, 0
    %s186 = sadd.s32 %s185, 1
    %s187 = scalar_select %p184, %s185, %s186
    %p190 = pneg %p184
    %p191 = scmp.eq.s32.totalorder %s25, 1
    %p192 = por %p190, %p191
    %p193 = scmp.ne.s32.totalorder %s185, %s188
    %p194 = scmp.eq.s32.totalorder %s25, 0
    %p195 = por %p193, %p194
    %p196 = scmp.ne.s32.totalorder %s185, %s188
    %p197 = scmp.eq.s32.totalorder %s30, 1
    %p198 = por %p196, %p197
    %p199 = scmp.ne.s32.totalorder %s188, %s189
    %p200 = scmp.eq.s32.totalorder %s30, 0
    %p201 = por %p199, %p200
    %p202 = scmp.ne.s32.totalorder %s188, %s189
    %p203 = scmp.eq.s32.totalorder %s31, 1
    %p204 = por %p202, %p203
    %p206 = scmp.ne.s32.totalorder %s189, %s205
    %p207 = scmp.eq.s32.totalorder %s31, 0
    %p208 = por %p206, %p207
    %p209 = scmp.le.s32.totalorder 1, %s25
    %p210 = scmp.lt.s32.totalorder %s25, 3
    %p211 = pnand %p209, %p210
    %p212 = pneg %p211
    // Predicated region
    $region9: #{gcn2_forward.3} parent=5 // pred_check
      _
    $region10: #{gcn2_forward.3} parent=5 // pred_check_branch
      %214 = sbr.rel (%p211) target = $region12
    $region11: #{gcn2_forward.3} parent=5 // pred_region
      %s215 = ssub.s32 %s25, 1
    $region12: #{gcn2_forward.3} parent=5 // pred_fallthru
      _
    %p216 = scmp.lt.s32.totalorder %s25, 2
    // Predicated region
    $region13: #{gcn2_forward.3} parent=5 // pred_check
      %p217 = pneg %p216
    $region14: #{gcn2_forward.3} parent=5 // pred_check_branch
      %219 = sbr.rel (%p217) target = $region16
    $region15: #{gcn2_forward.3} parent=5 // pred_region
      // Predicated region
      $region17: #{gcn2_forward.3} parent=15 // pred_check
        %p220 = pneg %p75
      $region18: #{gcn2_forward.3} parent=15 // pred_check_branch
        %222 = sbr.rel (%p220) target = $region20
      $region19: #{gcn2_forward.3} parent=15 // pred_region
        %s223 = sshra.s32 %s33, 7
        %s224 = sand.u32 %s33, 127
        %s225 = sadd.s32 %s223, %s32
        %s226 = smul.u32 %s225, 128
        %s227 = sshra.s32 %s33, 7
        %s228 = sand.u32 %s33, 127
        %s229 = sadd.s32 %s226, %s228
        %s230 = sld [smem:[#allocation3 + %s229]]
        %s231 = smul.u32 16, %s32
        %s232 = smul.u32 2, %s230
        %p233 = scmp.lt.s32.totalorder %s231, 31
        %s234 = scalar_select %p233, %s231, 31
        %p235 = scmp.lt.s32.totalorder %s232, 1
        %s236 = scalar_select %p235, %s232, 1
        %s237 = smul.addr %s234, 2
        %s238 = sadd.s32 %s236, %s237
        %s239 = smul.addr %s238, 4
        %s240 = scalar_lea.vmem %s2, %s239
        %s241 = sshra.s32 %s33, 7
        %s242 = sand.u32 %s33, 127
        %s243 = sadd.s32 %s241, %s32
        %s244 = smul.u32 %s243, 128
        %s245 = sshra.s32 %s33, 7
        %s246 = sand.u32 %s33, 127
        %s247 = sadd.s32 %s244, %s246
        %s248 = sld [smem:[#allocation3 + %s247]]
        %s249 = smul.u32 16, %s32
        %s250 = smul.u32 2, %s248
      $region20: #{gcn2_forward.3} parent=15 // pred_fallthru
        _
      // Predicated region
      $region21: #{gcn2_forward.3} parent=15 // pred_check
        %p251 = pneg %p117
      $region22: #{gcn2_forward.3} parent=15 // pred_check_branch
        %253 = sbr.rel (%p251) target = $region24
      $region23: #{gcn2_forward.3} parent=15 // pred_region
        %s254 = sshra.s32 %s33, 7
        %s255 = sand.u32 %s33, 127
        %s256 = sadd.s32 %s254, %s32
        %s257 = smul.u32 %s256, 128
        %s258 = sshra.s32 %s33, 7
        %s259 = sand.u32 %s33, 127
        %s260 = sadd.s32 %s257, %s259
        %s261 = sld [smem:[#allocation3 + %s260]]
        %s262 = smul.u32 32, %s261
        %p263 = scmp.lt.s32.totalorder %s262, 31
        %s264 = scalar_select %p263, %s262, 31
        %s265 = smul.addr %s264, 2
        %s266 = smul.addr %s265, 4
        %s267 = scalar_lea.vmem %s3, %s266
        %s268 = sshra.s32 %s33, 7
        %s269 = sand.u32 %s33, 127
        %s270 = sadd.s32 %s268, %s32
        %s271 = smul.u32 %s270, 128
        %s272 = sshra.s32 %s33, 7
        %s273 = sand.u32 %s33, 127
        %s274 = sadd.s32 %s271, %s273
        %s275 = sld [smem:[#allocation3 + %s274]]
        %s276 = smul.u32 32, %s275
      $region24: #{gcn2_forward.3} parent=15 // pred_fallthru
        _
      // Predicated region
      $region25: #{gcn2_forward.3} parent=15 // pred_check
        %p277 = pneg %p143
      $region26: #{gcn2_forward.3} parent=15 // pred_check_branch
        %279 = sbr.rel (%p277) target = $region28
      $region27: #{gcn2_forward.3} parent=15 // pred_region
        %s280 = smul.u32 16, %s32
        %p281 = scmp.lt.s32.totalorder %s280, 31
        %s282 = scalar_select %p281, %s280, 31
        %s283 = smul.addr %s282, 2
        %s284 = smul.addr %s283, 4
        %s285 = scalar_lea.vmem %s4, %s284
        %s286 = smul.u32 16, %s32
      $region28: #{gcn2_forward.3} parent=15 // pred_fallthru
        _
      // Predicated region
      $region29: #{gcn2_forward.3} parent=15 // pred_check
        %p287 = pneg %p169
      $region30: #{gcn2_forward.3} parent=15 // pred_check_branch
        %289 = sbr.rel (%p287) target = $region32
      $region31: #{gcn2_forward.3} parent=15 // pred_region
        %s290 = smul.u32 16, %s32
        %p291 = scmp.lt.s32.totalorder %s290, 31
        %s292 = scalar_select %p291, %s290, 31
        %s293 = smul.addr %s292, 8
        %s294 = scalar_lea.vmem %s5, %s293
        %s295 = smul.u32 16, %s32
      $region32: #{gcn2_forward.3} parent=15 // pred_fallthru
        _
    $region16: #{gcn2_forward.3} parent=5 // pred_fallthru
      _
    %p296 = scmp.le.s32.totalorder 1, %s25
    %p297 = scmp.lt.s32.totalorder %s25, 3
    %p298 = pnand %p296, %p297
    %p299 = pneg %p298
    // Predicated region
    $region33: #{gcn2_forward.3} parent=5 // pred_check
      _
    $region34: #{gcn2_forward.3} parent=5 // pred_check_branch
      %301 = sbr.rel (%p298) target = $region36
    $region35: #{gcn2_forward.3} parent=5 // pred_region
      %s302 = ssub.s32 %s25, 1
      %s303 = sshra.s32 %s35, 7
      %s304 = sand.u32 %s35, 127
      %s305 = sadd.s32 %s303, %s34
      %s306 = smul.u32 %s305, 128
      %s307 = sshra.s32 %s35, 7
      %s308 = sand.u32 %s35, 127
      %s309 = sadd.s32 %s306, %s308
      %s310 = sld [smem:[#allocation3 + %s309]]
      %s311 = smul.u32 16, %s34
      %s312 = smul.u32 2, %s310
      %p313 = scmp.lt.s32.totalorder %s311, 31
      %s314 = scalar_select %p313, %s311, 31
      %p315 = scmp.lt.s32.totalorder %s312, 1
      %s316 = scalar_select %p315, %s312, 1
      %s317 = smul.addr %s314, 2
      %s318 = sadd.s32 %s316, %s317
      %s319 = smul.addr %s318, 4
      %s320 = scalar_lea.vmem %s2, %s319
      %p321 = pneg %p81
      %p322 = pneg %p78
      %s323 = sshra.s32 %s35, 7
      %s324 = sand.u32 %s35, 127
      %s325 = sadd.s32 %s323, %s34
      %s326 = smul.u32 %s325, 128
      %s327 = sshra.s32 %s35, 7
      %s328 = sand.u32 %s35, 127
      %s329 = sadd.s32 %s326, %s328
      %s330 = sld [smem:[#allocation3 + %s329]]
      %s331 = smul.u32 32, %s330
      %p332 = scmp.lt.s32.totalorder %s331, 31
      %s333 = scalar_select %p332, %s331, 31
      %s334 = smul.addr %s333, 2
      %s335 = smul.addr %s334, 4
      %s336 = scalar_lea.vmem %s3, %s335
      %p337 = pneg %p123
      %p338 = pneg %p120
      %s339 = smul.u32 16, %s34
      %p340 = scmp.lt.s32.totalorder %s339, 31
      %s341 = scalar_select %p340, %s339, 31
      %s342 = smul.addr %s341, 2
      %s343 = smul.addr %s342, 4
      %s344 = scalar_lea.vmem %s4, %s343
      %p345 = pneg %p149
      %p346 = pneg %p146
      %s347 = smul.u32 16, %s34
      %p348 = scmp.lt.s32.totalorder %s347, 31
      %s349 = scalar_select %p348, %s347, 31
      %s350 = smul.addr %s349, 8
      %s351 = scalar_lea.vmem %s5, %s350
      %p352 = pneg %p175
      %p353 = pneg %p172
      %p354 = pneg %p201
      %p355 = pneg %p198
      %s356 = smul.u32 16, %s34
      %p357 = scmp.lt.s32.totalorder %s356, 31
      %s358 = scalar_select %p357, %s356, 31
      %s359 = smul.addr %s358, 2
      %s360 = smul.addr %s359, 8
      %s361 = scalar_lea.vmem %s6, %s360
      %s362 = sshra.s32 %s35, 7
      %s363 = sand.u32 %s35, 127
      %s364 = sadd.s32 %s362, %s34
      %s365 = smul.u32 %s364, 128
      %s366 = sshra.s32 %s35, 7
      %s367 = sand.u32 %s35, 127
      %s368 = sadd.s32 %s365, %s367
      %s369 = sld [smem:[#allocation3 + %s368]]
      %s370 = smul.u32 16, %s34
      %s371 = smul.u32 2, %s369
      %p372 = scmp.lt.s32.totalorder %s370, 31
      %s373 = scalar_select %p372, %s370, 31
      %p374 = scmp.lt.s32.totalorder %s371, 1
      %s375 = scalar_select %p374, %s371, 1
      %s376 = smul.addr %s373, 2
      %s377 = sadd.s32 %s375, %s376
      %s378 = smul.addr %s377, 4
      %s379 = scalar_lea.vmem %s2, %s378
      %s380 = sshra.s32 %s35, 7
      %s381 = sand.u32 %s35, 127
      %s382 = sadd.s32 %s380, %s34
      %s383 = smul.u32 %s382, 128
      %s384 = sshra.s32 %s35, 7
      %s385 = sand.u32 %s35, 127
      %s386 = sadd.s32 %s383, %s385
      %s387 = sld [smem:[#allocation3 + %s386]]
      %s388 = smul.u32 16, %s34
      %s389 = smul.u32 2, %s387
      %s390 = sshra.s32 %s35, 7
      %s391 = sand.u32 %s35, 127
      %s392 = sadd.s32 %s390, %s34
      %s393 = smul.u32 %s392, 128
      %s394 = sshra.s32 %s35, 7
      %s395 = sand.u32 %s35, 127
      %s396 = sadd.s32 %s393, %s395
      %s397 = sld [smem:[#allocation3 + %s396]]
      %s398 = smul.u32 32, %s397
      %p399 = scmp.lt.s32.totalorder %s398, 31
      %s400 = scalar_select %p399, %s398, 31
      %s401 = smul.addr %s400, 2
      %s402 = smul.addr %s401, 4
      %s403 = scalar_lea.vmem %s3, %s402
      %s404 = sshra.s32 %s35, 7
      %s405 = sand.u32 %s35, 127
      %s406 = sadd.s32 %s404, %s34
      %s407 = smul.u32 %s406, 128
      %s408 = sshra.s32 %s35, 7
      %s409 = sand.u32 %s35, 127
      %s410 = sadd.s32 %s407, %s409
      %s411 = sld [smem:[#allocation3 + %s410]]
      %s412 = smul.u32 32, %s411
      %s413 = smul.u32 16, %s34
      %p414 = scmp.lt.s32.totalorder %s413, 31
      %s415 = scalar_select %p414, %s413, 31
      %s416 = smul.addr %s415, 2
      %s417 = smul.addr %s416, 4
      %s418 = scalar_lea.vmem %s4, %s417
      %s419 = smul.u32 16, %s34
      %s420 = smul.u32 16, %s34
      %p421 = scmp.lt.s32.totalorder %s420, 31
      %s422 = scalar_select %p421, %s420, 31
      %s423 = smul.addr %s422, 8
      %s424 = scalar_lea.vmem %s5, %s423
      %s425 = smul.u32 16, %s34
      %s426 = smul.u32 16, %s34
      %p427 = scmp.lt.s32.totalorder %s426, 31
      %s428 = scalar_select %p427, %s426, 31
      %s429 = smul.addr %s428, 2
      %s430 = smul.addr %s429, 8
      %s431 = scalar_lea.vmem %s6, %s430
      %s432 = smul.u32 16, %s34
      %p433 = scmp.eq.s32.totalorder %s35, 0
      // Predicated region
      $region37: #{gcn2_forward.3} parent=35 // pred_check
        %p434 = pneg %p433
      $region38: #{gcn2_forward.3} parent=35 // pred_check_branch
        %436 = sbr.rel (%p434) target = $region40
      $region39: #{gcn2_forward.3} parent=35 // pred_region
        %437 = vst [vmem:[%s431] sm:$0xff] 0.0
        %438 = vst [vmem:[%s431 + $0x8] sm:$0xff] 0.0
        %439 = vst [vmem:[%s431 + $0x10] sm:$0xff] 0.0
        %440 = vst [vmem:[%s431 + $0x18] sm:$0xff] 0.0
        %441 = vst [vmem:[%s431 + $0x20] sm:$0xff] 0.0
        %442 = vst [vmem:[%s431 + $0x28] sm:$0xff] 0.0
        %443 = vst [vmem:[%s431 + $0x30] sm:$0xff] 0.0
        %444 = vst [vmem:[%s431 + $0x38] sm:$0xff] 0.0
        %445 = vst [vmem:[%s431 + $0x40] sm:$0xff] 0.0
        %446 = vst [vmem:[%s431 + $0x48] sm:$0xff] 0.0
        %447 = vst [vmem:[%s431 + $0x50] sm:$0xff] 0.0
        %448 = vst [vmem:[%s431 + $0x58] sm:$0xff] 0.0
        %449 = vst [vmem:[%s431 + $0x60] sm:$0xff] 0.0
        %450 = vst [vmem:[%s431 + $0x68] sm:$0xff] 0.0
        %451 = vst [vmem:[%s431 + $0x70] sm:$0xff] 0.0
        %452 = vst [vmem:[%s431 + $0x78] sm:$0xff] 0.0
        %453 = vst [vmem:[%s431 + $0x80] sm:$0xff] 0.0
        %454 = vst [vmem:[%s431 + $0x88] sm:$0xff] 0.0
        %455 = vst [vmem:[%s431 + $0x90] sm:$0xff] 0.0
        %456 = vst [vmem:[%s431 + $0x98] sm:$0xff] 0.0
        %457 = vst [vmem:[%s431 + $0xa0] sm:$0xff] 0.0
        %458 = vst [vmem:[%s431 + $0xa8] sm:$0xff] 0.0
        %459 = vst [vmem:[%s431 + $0xb0] sm:$0xff] 0.0
        %460 = vst [vmem:[%s431 + $0xb8] sm:$0xff] 0.0
        %461 = vst [vmem:[%s431 + $0xc0] sm:$0xff] 0.0
        %462 = vst [vmem:[%s431 + $0xc8] sm:$0xff] 0.0
        %463 = vst [vmem:[%s431 + $0xd0] sm:$0xff] 0.0
        %464 = vst [vmem:[%s431 + $0xd8] sm:$0xff] 0.0
        %465 = vst [vmem:[%s431 + $0xe0] sm:$0xff] 0.0
        %466 = vst [vmem:[%s431 + $0xe8] sm:$0xff] 0.0
        %467 = vst [vmem:[%s431 + $0xf0] sm:$0xff] 0.0
        %468 = vst [vmem:[%s431 + $0xf8] sm:$0xff] 0.0
      $region40: #{gcn2_forward.3} parent=35 // pred_fallthru
        _
      %s469 = sld [smem:[#allocation4 + %s34]]
      %p470 = scmp.lt.s32.totalorder %s35, %s469
      // Predicated region
      $region41: #{gcn2_forward.3} parent=35 // pred_check
        %p471 = pneg %p470
      $region42: #{gcn2_forward.3} parent=35 // pred_check_branch
        %473 = sbr.rel (%p471) target = $region44
      $region43: #{gcn2_forward.3} parent=35 // pred_region
        %v474 = vld [vmem:[%s431] sm:$0xff]
        %v475 = vld [vmem:[%s431 + $0x8] sm:$0xff]
        %v476 = vld [vmem:[%s431 + $0x10] sm:$0xff]
        %v477 = vld [vmem:[%s431 + $0x18] sm:$0xff]
        %v478 = vld [vmem:[%s431 + $0x20] sm:$0xff]
        %v479 = vld [vmem:[%s431 + $0x28] sm:$0xff]
        %v480 = vld [vmem:[%s431 + $0x30] sm:$0xff]
        %v481 = vld [vmem:[%s431 + $0x38] sm:$0xff]
        %v482 = vld [vmem:[%s431 + $0x40] sm:$0xff]
        %v483 = vld [vmem:[%s431 + $0x48] sm:$0xff]
        %v484 = vld [vmem:[%s431 + $0x50] sm:$0xff]
        %v485 = vld [vmem:[%s431 + $0x58] sm:$0xff]
        %v486 = vld [vmem:[%s431 + $0x60] sm:$0xff]
        %v487 = vld [vmem:[%s431 + $0x68] sm:$0xff]
        %v488 = vld [vmem:[%s431 + $0x70] sm:$0xff]
        %v489 = vld [vmem:[%s431 + $0x78] sm:$0xff]
        %v490 = vld [vmem:[%s431 + $0x80] sm:$0xff]
        %v491 = vld [vmem:[%s431 + $0x88] sm:$0xff]
        %v492 = vld [vmem:[%s431 + $0x90] sm:$0xff]
        %v493 = vld [vmem:[%s431 + $0x98] sm:$0xff]
        %v494 = vld [vmem:[%s431 + $0xa0] sm:$0xff]
        %v495 = vld [vmem:[%s431 + $0xa8] sm:$0xff]
        %v496 = vld [vmem:[%s431 + $0xb0] sm:$0xff]
        %v497 = vld [vmem:[%s431 + $0xb8] sm:$0xff]
        %v498 = vld [vmem:[%s431 + $0xc0] sm:$0xff]
        %v499 = vld [vmem:[%s431 + $0xc8] sm:$0xff]
        %v500 = vld [vmem:[%s431 + $0xd0] sm:$0xff]
        %v501 = vld [vmem:[%s431 + $0xd8] sm:$0xff]
        %v502 = vld [vmem:[%s431 + $0xe0] sm:$0xff]
        %v503 = vld [vmem:[%s431 + $0xe8] sm:$0xff]
        %v504 = vld [vmem:[%s431 + $0xf0] sm:$0xff]
        %v505 = vld [vmem:[%s431 + $0xf8] sm:$0xff]
        %v506 = vld [vmem:[%s379] sm:$0xff]
        %v507 = vld [vmem:[%s379 + $0x8] sm:$0xff]
        %v508 = vld [vmem:[%s379 + $0x10] sm:$0xff]
        %v509 = vld [vmem:[%s379 + $0x18] sm:$0xff]
        %v510 = vld [vmem:[%s379 + $0x20] sm:$0xff]
        %v511 = vld [vmem:[%s379 + $0x28] sm:$0xff]
        %v512 = vld [vmem:[%s379 + $0x30] sm:$0xff]
        %v513 = vld [vmem:[%s379 + $0x38] sm:$0xff]
        %v514 = vld [vmem:[%s379 + $0x40] sm:$0xff]
        %v515 = vld [vmem:[%s379 + $0x48] sm:$0xff]
        %v516 = vld [vmem:[%s379 + $0x50] sm:$0xff]
        %v517 = vld [vmem:[%s379 + $0x58] sm:$0xff]
        %v518 = vld [vmem:[%s379 + $0x60] sm:$0xff]
        %v519 = vld [vmem:[%s379 + $0x68] sm:$0xff]
        %v520 = vld [vmem:[%s379 + $0x70] sm:$0xff]
        %v521 = vld [vmem:[%s379 + $0x78] sm:$0xff]
        %v522 = vld [vmem:[%s403] sm:$0xff]
        %v523 = vld [vmem:[%s403 + $0x8] sm:$0xff]
        %v524 = vld [vmem:[%s403 + $0x10] sm:$0xff]
        %v525 = vld [vmem:[%s403 + $0x18] sm:$0xff]
        %v526 = vld [vmem:[%s403 + $0x20] sm:$0xff]
        %v527 = vld [vmem:[%s403 + $0x28] sm:$0xff]
        %v528 = vld [vmem:[%s403 + $0x30] sm:$0xff]
        %v529 = vld [vmem:[%s403 + $0x38] sm:$0xff]
        %v530 = vld [vmem:[%s403 + $0x40] sm:$0xff]
        %v531 = vld [vmem:[%s403 + $0x48] sm:$0xff]
        %v532 = vld [vmem:[%s403 + $0x50] sm:$0xff]
        %v533 = vld [vmem:[%s403 + $0x58] sm:$0xff]
        %v534 = vld [vmem:[%s403 + $0x60] sm:$0xff]
        %v535 = vld [vmem:[%s403 + $0x68] sm:$0xff]
        %v536 = vld [vmem:[%s403 + $0x70] sm:$0xff]
        %v537 = vld [vmem:[%s403 + $0x78] sm:$0xff]
        %v538 = vld [vmem:[%s403 + $0x80] sm:$0xff]
        %v539 = vld [vmem:[%s403 + $0x88] sm:$0xff]
        %v540 = vld [vmem:[%s403 + $0x90] sm:$0xff]
        %v541 = vld [vmem:[%s403 + $0x98] sm:$0xff]
        %v542 = vld [vmem:[%s403 + $0xa0] sm:$0xff]
        %v543 = vld [vmem:[%s403 + $0xa8] sm:$0xff]
        %v544 = vld [vmem:[%s403 + $0xb0] sm:$0xff]
        %v545 = vld [vmem:[%s403 + $0xb8] sm:$0xff]
        %v546 = vld [vmem:[%s403 + $0xc0] sm:$0xff]
        %v547 = vld [vmem:[%s403 + $0xc8] sm:$0xff]
        %v548 = vld [vmem:[%s403 + $0xd0] sm:$0xff]
        %v549 = vld [vmem:[%s403 + $0xd8] sm:$0xff]
        %v550 = vld [vmem:[%s403 + $0xe0] sm:$0xff]
        %v551 = vld [vmem:[%s403 + $0xe8] sm:$0xff]
        %v552 = vld [vmem:[%s403 + $0xf0] sm:$0xff]
        %v553 = vld [vmem:[%s403 + $0xf8] sm:$0xff]
        %v570 = vunpack.c.l.b16 %v506
        %v571 = vunpack.c.h.b16 %v506
        %v572 = vunpack.c.l.b16 %v507
        %v573 = vunpack.c.h.b16 %v507
        %v574 = vunpack.c.l.b16 %v508
        %v575 = vunpack.c.h.b16 %v508
        %v576 = vunpack.c.l.b16 %v509
        %v577 = vunpack.c.h.b16 %v509
        %v578 = vunpack.c.l.b16 %v510
        %v579 = vunpack.c.h.b16 %v510
        %v580 = vunpack.c.l.b16 %v511
        %v581 = vunpack.c.h.b16 %v511
        %v582 = vunpack.c.l.b16 %v512
        %v583 = vunpack.c.h.b16 %v512
        %v584 = vunpack.c.l.b16 %v513
        %v585 = vunpack.c.h.b16 %v513
        %v586 = vunpack.c.l.b16 %v514
        %v587 = vunpack.c.h.b16 %v514
        %v588 = vunpack.c.l.b16 %v515
        %v589 = vunpack.c.h.b16 %v515
        %v590 = vunpack.c.l.b16 %v516
        %v591 = vunpack.c.h.b16 %v516
        %v592 = vunpack.c.l.b16 %v517
        %v593 = vunpack.c.h.b16 %v517
        %v594 = vunpack.c.l.b16 %v518
        %v595 = vunpack.c.h.b16 %v518
        %v596 = vunpack.c.l.b16 %v519
        %v597 = vunpack.c.h.b16 %v519
        %v598 = vunpack.c.l.b16 %v520
        %v599 = vunpack.c.h.b16 %v520
        %v600 = vunpack.c.l.b16 %v521
        %v601 = vunpack.c.h.b16 %v521
        %v602 = vpack.c.b16 %v572, %v570
        %v603 = vpack.c.b16 %v573, %v571
        %v604 = vpack.c.b16 %v576, %v574
        %v605 = vpack.c.b16 %v577, %v575
        %v606 = vpack.c.b16 %v580, %v578
        %v607 = vpack.c.b16 %v581, %v579
        %v608 = vpack.c.b16 %v584, %v582
        %v609 = vpack.c.b16 %v585, %v583
        %v610 = vpack.c.b16 %v588, %v586
        %v611 = vpack.c.b16 %v589, %v587
        %v612 = vpack.c.b16 %v592, %v590
        %v613 = vpack.c.b16 %v593, %v591
        %v614 = vpack.c.b16 %v596, %v594
        %v615 = vpack.c.b16 %v597, %v595
        %v616 = vpack.c.b16 %v600, %v598
        %v617 = vpack.c.b16 %v601, %v599
        %v666 = vunpack.c.l.b16 %v522
        %v667 = vunpack.c.h.b16 %v522
        %v668 = vunpack.c.l.b16 %v523
        %v669 = vunpack.c.h.b16 %v523
        %v670 = vunpack.c.l.b16 %v524
        %v671 = vunpack.c.h.b16 %v524
        %v672 = vunpack.c.l.b16 %v525
        %v673 = vunpack.c.h.b16 %v525
        %v674 = vunpack.c.l.b16 %v526
        %v675 = vunpack.c.h.b16 %v526
        %v676 = vunpack.c.l.b16 %v527
        %v677 = vunpack.c.h.b16 %v527
        %v678 = vunpack.c.l.b16 %v528
        %v679 = vunpack.c.h.b16 %v528
        %v680 = vunpack.c.l.b16 %v529
        %v681 = vunpack.c.h.b16 %v529
        %v682 = vunpack.c.l.b16 %v530
        %v683 = vunpack.c.h.b16 %v530
        %v684 = vunpack.c.l.b16 %v531
        %v685 = vunpack.c.h.b16 %v531
        %v686 = vunpack.c.l.b16 %v532
        %v687 = vunpack.c.h.b16 %v532
        %v688 = vunpack.c.l.b16 %v533
        %v689 = vunpack.c.h.b16 %v533
        %v690 = vunpack.c.l.b16 %v534
        %v691 = vunpack.c.h.b16 %v534
        %v692 = vunpack.c.l.b16 %v535
        %v693 = vunpack.c.h.b16 %v535
        %v694 = vunpack.c.l.b16 %v536
        %v695 = vunpack.c.h.b16 %v536
        %v696 = vunpack.c.l.b16 %v537
        %v697 = vunpack.c.h.b16 %v537
        %v698 = vunpack.c.l.b16 %v538
        %v699 = vunpack.c.h.b16 %v538
        %v700 = vunpack.c.l.b16 %v539
        %v701 = vunpack.c.h.b16 %v539
        %v702 = vunpack.c.l.b16 %v540
        %v703 = vunpack.c.h.b16 %v540
        %v704 = vunpack.c.l.b16 %v541
        %v705 = vunpack.c.h.b16 %v541
        %v706 = vunpack.c.l.b16 %v542
        %v707 = vunpack.c.h.b16 %v542
        %v708 = vunpack.c.l.b16 %v543
        %v709 = vunpack.c.h.b16 %v543
        %v710 = vunpack.c.l.b16 %v544
        %v711 = vunpack.c.h.b16 %v544
        %v712 = vunpack.c.l.b16 %v545
        %v713 = vunpack.c.h.b16 %v545
        %v714 = vunpack.c.l.b16 %v546
        %v715 = vunpack.c.h.b16 %v546
        %v716 = vunpack.c.l.b16 %v547
        %v717 = vunpack.c.h.b16 %v547
        %v718 = vunpack.c.l.b16 %v548
        %v719 = vunpack.c.h.b16 %v548
        %v720 = vunpack.c.l.b16 %v549
        %v721 = vunpack.c.h.b16 %v549
        %v722 = vunpack.c.l.b16 %v550
        %v723 = vunpack.c.h.b16 %v550
        %v724 = vunpack.c.l.b16 %v551
        %v725 = vunpack.c.h.b16 %v551
        %v726 = vunpack.c.l.b16 %v552
        %v727 = vunpack.c.h.b16 %v552
        %v728 = vunpack.c.l.b16 %v553
        %v729 = vunpack.c.h.b16 %v553
        %v730 = vpack.c.b16 %v668, %v666
        %v731 = vpack.c.b16 %v669, %v667
        %v732 = vpack.c.b16 %v672, %v670
        %v733 = vpack.c.b16 %v673, %v671
        %v734 = vpack.c.b16 %v676, %v674
        %v735 = vpack.c.b16 %v677, %v675
        %v736 = vpack.c.b16 %v680, %v678
        %v737 = vpack.c.b16 %v681, %v679
        %v738 = vpack.c.b16 %v684, %v682
        %v739 = vpack.c.b16 %v685, %v683
        %v740 = vpack.c.b16 %v688, %v686
        %v741 = vpack.c.b16 %v689, %v687
        %v742 = vpack.c.b16 %v692, %v690
        %v743 = vpack.c.b16 %v693, %v691
        %v744 = vpack.c.b16 %v696, %v694
        %v745 = vpack.c.b16 %v697, %v695
        %v746 = vpack.c.b16 %v700, %v698
        %v747 = vpack.c.b16 %v701, %v699
        %v748 = vpack.c.b16 %v704, %v702
        %v749 = vpack.c.b16 %v705, %v703
        %v750 = vpack.c.b16 %v708, %v706
        %v751 = vpack.c.b16 %v709, %v707
        %v752 = vpack.c.b16 %v712, %v710
        %v753 = vpack.c.b16 %v713, %v711
        %v754 = vpack.c.b16 %v716, %v714
        %v755 = vpack.c.b16 %v717, %v715
        %v756 = vpack.c.b16 %v720, %v718
        %v757 = vpack.c.b16 %v721, %v719
        %v758 = vpack.c.b16 %v724, %v722
        %v759 = vpack.c.b16 %v725, %v723
        %v760 = vpack.c.b16 %v728, %v726
        %v761 = vpack.c.b16 %v729, %v727
        %794 = vmatpush.bf16.msra.mxu0 %v744
        %795 = vmatpush.bf16.msra.mxu0 %v742
        %796 = vmatpush.bf16.msra.mxu0 %v740
        %797 = vmatpush.bf16.msra.mxu0 %v738
        %798 = vmatpush.bf16.msra.mxu0 %v736
        %799 = vmatpush.bf16.msra.mxu0 %v734
        %800 = vmatpush.bf16.msra.mxu0 %v732
        %801 = vmatpush.bf16.msra.mxu0 %v730
        %802 = vmatmul.bf16.gmra.mxu0 %v602
        %v803 = vpop.f32.mrf.mxu0
        %v804 = vadd.f32 0.0, %v803
        %v805 = vpop.f32.mrf.mxu0
        %v806 = vadd.f32 0.0, %v805
        %807 = vmatmul.bf16.gmra.mxu0 %v604
        %v808 = vpop.f32.mrf.mxu0
        %v809 = vadd.f32 0.0, %v808
        %v810 = vpop.f32.mrf.mxu0
        %v811 = vadd.f32 0.0, %v810
        %812 = vmatmul.bf16.gmra.mxu0 %v606
        %v813 = vpop.f32.mrf.mxu0
        %v814 = vadd.f32 0.0, %v813
        %v815 = vpop.f32.mrf.mxu0
        %v816 = vadd.f32 0.0, %v815
        %817 = vmatmul.bf16.gmra.mxu0 %v608
        %v818 = vpop.f32.mrf.mxu0
        %v819 = vadd.f32 0.0, %v818
        %v820 = vpop.f32.mrf.mxu0
        %v821 = vadd.f32 0.0, %v820
        %822 = vmatmul.bf16.gmra.mxu0 %v610
        %v823 = vpop.f32.mrf.mxu0
        %v824 = vadd.f32 0.0, %v823
        %v825 = vpop.f32.mrf.mxu0
        %v826 = vadd.f32 0.0, %v825
        %827 = vmatmul.bf16.gmra.mxu0 %v612
        %v828 = vpop.f32.mrf.mxu0
        %v829 = vadd.f32 0.0, %v828
        %v830 = vpop.f32.mrf.mxu0
        %v831 = vadd.f32 0.0, %v830
        %832 = vmatmul.bf16.gmra.mxu0 %v614
        %v833 = vpop.f32.mrf.mxu0
        %v834 = vadd.f32 0.0, %v833
        %v835 = vpop.f32.mrf.mxu0
        %v836 = vadd.f32 0.0, %v835
        %837 = vmatmul.bf16.gmra.mxu0 %v616
        %v838 = vpop.f32.mrf.mxu0
        %v839 = vadd.f32 0.0, %v838
        %v840 = vpop.f32.mrf.mxu0
        %v841 = vadd.f32 0.0, %v840
        %842 = vdwg.mxu0
        %843 = vmatpush.bf16.msra.mxu0 %v760
        %844 = vmatpush.bf16.msra.mxu0 %v758
        %845 = vmatpush.bf16.msra.mxu0 %v756
        %846 = vmatpush.bf16.msra.mxu0 %v754
        %847 = vmatpush.bf16.msra.mxu0 %v752
        %848 = vmatpush.bf16.msra.mxu0 %v750
        %849 = vmatpush.bf16.msra.mxu0 %v748
        %850 = vmatpush.bf16.msra.mxu0 %v746
        %851 = vmatmul.bf16.gmra.mxu0 %v603
        %v852 = vpop.f32.mrf.mxu0
        %v853 = vadd.f32 %v804, %v852
        %v854 = vpop.f32.mrf.mxu0
        %v855 = vadd.f32 %v806, %v854
        %856 = vmatmul.bf16.gmra.mxu0 %v605
        %v857 = vpop.f32.mrf.mxu0
        %v858 = vadd.f32 %v809, %v857
        %v859 = vpop.f32.mrf.mxu0
        %v860 = vadd.f32 %v811, %v859
        %861 = vmatmul.bf16.gmra.mxu0 %v607
        %v862 = vpop.f32.mrf.mxu0
        %v863 = vadd.f32 %v814, %v862
        %v864 = vpop.f32.mrf.mxu0
        %v865 = vadd.f32 %v816, %v864
        %866 = vmatmul.bf16.gmra.mxu0 %v609
        %v867 = vpop.f32.mrf.mxu0
        %v868 = vadd.f32 %v819, %v867
        %v869 = vpop.f32.mrf.mxu0
        %v870 = vadd.f32 %v821, %v869
        %871 = vmatmul.bf16.gmra.mxu0 %v611
        %v872 = vpop.f32.mrf.mxu0
        %v873 = vadd.f32 %v824, %v872
        %v874 = vpop.f32.mrf.mxu0
        %v875 = vadd.f32 %v826, %v874
        %876 = vmatmul.bf16.gmra.mxu0 %v613
        %v877 = vpop.f32.mrf.mxu0
        %v878 = vadd.f32 %v829, %v877
        %v879 = vpop.f32.mrf.mxu0
        %v880 = vadd.f32 %v831, %v879
        %881 = vmatmul.bf16.gmra.mxu0 %v615
        %v882 = vpop.f32.mrf.mxu0
        %v883 = vadd.f32 %v834, %v882
        %v884 = vpop.f32.mrf.mxu0
        %v885 = vadd.f32 %v836, %v884
        %886 = vmatmul.bf16.gmra.mxu0 %v617
        %v887 = vpop.f32.mrf.mxu0
        %v888 = vadd.f32 %v839, %v887
        %v889 = vpop.f32.mrf.mxu0
        %v890 = vadd.f32 %v841, %v889
        %891 = vdwg.mxu0
        %892 = vmatpush.bf16.msra.mxu0 %v745
        %893 = vmatpush.bf16.msra.mxu0 %v743
        %894 = vmatpush.bf16.msra.mxu0 %v741
        %895 = vmatpush.bf16.msra.mxu0 %v739
        %896 = vmatpush.bf16.msra.mxu0 %v737
        %897 = vmatpush.bf16.msra.mxu0 %v735
        %898 = vmatpush.bf16.msra.mxu0 %v733
        %899 = vmatpush.bf16.msra.mxu0 %v731
        %900 = vmatmul.bf16.gmra.mxu0 %v602
        %v901 = vpop.f32.mrf.mxu0
        %v902 = vadd.f32 0.0, %v901
        %v903 = vpop.f32.mrf.mxu0
        %v904 = vadd.f32 0.0, %v903
        %905 = vmatmul.bf16.gmra.mxu0 %v604
        %v906 = vpop.f32.mrf.mxu0
        %v907 = vadd.f32 0.0, %v906
        %v908 = vpop.f32.mrf.mxu0
        %v909 = vadd.f32 0.0, %v908
        %910 = vmatmul.bf16.gmra.mxu0 %v606
        %v911 = vpop.f32.mrf.mxu0
        %v912 = vadd.f32 0.0, %v911
        %v913 = vpop.f32.mrf.mxu0
        %v914 = vadd.f32 0.0, %v913
        %915 = vmatmul.bf16.gmra.mxu0 %v608
        %v916 = vpop.f32.mrf.mxu0
        %v917 = vadd.f32 0.0, %v916
        %v918 = vpop.f32.mrf.mxu0
        %v919 = vadd.f32 0.0, %v918
        %920 = vmatmul.bf16.gmra.mxu0 %v610
        %v921 = vpop.f32.mrf.mxu0
        %v922 = vadd.f32 0.0, %v921
        %v923 = vpop.f32.mrf.mxu0
        %v924 = vadd.f32 0.0, %v923
        %925 = vmatmul.bf16.gmra.mxu0 %v612
        %v926 = vpop.f32.mrf.mxu0
        %v927 = vadd.f32 0.0, %v926
        %v928 = vpop.f32.mrf.mxu0
        %v929 = vadd.f32 0.0, %v928
        %930 = vmatmul.bf16.gmra.mxu0 %v614
        %v931 = vpop.f32.mrf.mxu0
        %v932 = vadd.f32 0.0, %v931
        %v933 = vpop.f32.mrf.mxu0
        %v934 = vadd.f32 0.0, %v933
        %935 = vmatmul.bf16.gmra.mxu0 %v616
        %v936 = vpop.f32.mrf.mxu0
        %v937 = vadd.f32 0.0, %v936
        %v938 = vpop.f32.mrf.mxu0
        %v939 = vadd.f32 0.0, %v938
        %940 = vdwg.mxu0
        %941 = vmatpush.bf16.msra.mxu0 %v761
        %942 = vmatpush.bf16.msra.mxu0 %v759
        %943 = vmatpush.bf16.msra.mxu0 %v757
        %944 = vmatpush.bf16.msra.mxu0 %v755
        %945 = vmatpush.bf16.msra.mxu0 %v753
        %946 = vmatpush.bf16.msra.mxu0 %v751
        %947 = vmatpush.bf16.msra.mxu0 %v749
        %948 = vmatpush.bf16.msra.mxu0 %v747
        %949 = vmatmul.bf16.gmra.mxu0 %v603
        %v950 = vpop.f32.mrf.mxu0
        %v951 = vadd.f32 %v902, %v950
        %v952 = vpop.f32.mrf.mxu0
        %v953 = vadd.f32 %v904, %v952
        %954 = vmatmul.bf16.gmra.mxu0 %v605
        %v955 = vpop.f32.mrf.mxu0
        %v956 = vadd.f32 %v907, %v955
        %v957 = vpop.f32.mrf.mxu0
        %v958 = vadd.f32 %v909, %v957
        %959 = vmatmul.bf16.gmra.mxu0 %v607
        %v960 = vpop.f32.mrf.mxu0
        %v961 = vadd.f32 %v912, %v960
        %v962 = vpop.f32.mrf.mxu0
        %v963 = vadd.f32 %v914, %v962
        %964 = vmatmul.bf16.gmra.mxu0 %v609
        %v965 = vpop.f32.mrf.mxu0
        %v966 = vadd.f32 %v917, %v965
        %v967 = vpop.f32.mrf.mxu0
        %v968 = vadd.f32 %v919, %v967
        %969 = vmatmul.bf16.gmra.mxu0 %v611
        %v970 = vpop.f32.mrf.mxu0
        %v971 = vadd.f32 %v922, %v970
        %v972 = vpop.f32.mrf.mxu0
        %v973 = vadd.f32 %v924, %v972
        %974 = vmatmul.bf16.gmra.mxu0 %v613
        %v975 = vpop.f32.mrf.mxu0
        %v976 = vadd.f32 %v927, %v975
        %v977 = vpop.f32.mrf.mxu0
        %v978 = vadd.f32 %v929, %v977
        %979 = vmatmul.bf16.gmra.mxu0 %v615
        %v980 = vpop.f32.mrf.mxu0
        %v981 = vadd.f32 %v932, %v980
        %v982 = vpop.f32.mrf.mxu0
        %v983 = vadd.f32 %v934, %v982
        %984 = vmatmul.bf16.gmra.mxu0 %v617
        %v985 = vpop.f32.mrf.mxu0
        %v986 = vadd.f32 %v937, %v985
        %v987 = vpop.f32.mrf.mxu0
        %v988 = vadd.f32 %v939, %v987
        %989 = vdwg.mxu0
        %v990 = vadd.f32 %v474, %v853
        %v991 = vadd.f32 %v475, %v951
        %v992 = vadd.f32 %v476, %v855
        %v993 = vadd.f32 %v477, %v953
        %v994 = vadd.f32 %v478, %v858
        %v995 = vadd.f32 %v479, %v956
        %v996 = vadd.f32 %v480, %v860
        %v997 = vadd.f32 %v481, %v958
        %v998 = vadd.f32 %v482, %v863
        %v999 = vadd.f32 %v483, %v961
        %v1000 = vadd.f32 %v484, %v865
        %v1001 = vadd.f32 %v485, %v963
        %v1002 = vadd.f32 %v486, %v868
        %v1003 = vadd.f32 %v487, %v966
        %v1004 = vadd.f32 %v488, %v870
        %v1005 = vadd.f32 %v489, %v968
        %v1006 = vadd.f32 %v490, %v873
        %v1007 = vadd.f32 %v491, %v971
        %v1008 = vadd.f32 %v492, %v875
        %v1009 = vadd.f32 %v493, %v973
        %v1010 = vadd.f32 %v494, %v878
        %v1011 = vadd.f32 %v495, %v976
        %v1012 = vadd.f32 %v496, %v880
        %v1013 = vadd.f32 %v497, %v978
        %v1014 = vadd.f32 %v498, %v883
        %v1015 = vadd.f32 %v499, %v981
        %v1016 = vadd.f32 %v500, %v885
        %v1017 = vadd.f32 %v501, %v983
        %v1018 = vadd.f32 %v502, %v888
        %v1019 = vadd.f32 %v503, %v986
        %v1020 = vadd.f32 %v504, %v890
        %v1021 = vadd.f32 %v505, %v988
        %1022 = vst [vmem:[%s431] sm:$0xff] %v990
        %1023 = vst [vmem:[%s431 + $0x8] sm:$0xff] %v991
        %1024 = vst [vmem:[%s431 + $0x10] sm:$0xff] %v992
        %1025 = vst [vmem:[%s431 + $0x18] sm:$0xff] %v993
        %1026 = vst [vmem:[%s431 + $0x20] sm:$0xff] %v994
        %1027 = vst [vmem:[%s431 + $0x28] sm:$0xff] %v995
        %1028 = vst [vmem:[%s431 + $0x30] sm:$0xff] %v996
        %1029 = vst [vmem:[%s431 + $0x38] sm:$0xff] %v997
        %1030 = vst [vmem:[%s431 + $0x40] sm:$0xff] %v998
        %1031 = vst [vmem:[%s431 + $0x48] sm:$0xff] %v999
        %1032 = vst [vmem:[%s431 + $0x50] sm:$0xff] %v1000
        %1033 = vst [vmem:[%s431 + $0x58] sm:$0xff] %v1001
        %1034 = vst [vmem:[%s431 + $0x60] sm:$0xff] %v1002
        %1035 = vst [vmem:[%s431 + $0x68] sm:$0xff] %v1003
        %1036 = vst [vmem:[%s431 + $0x70] sm:$0xff] %v1004
        %1037 = vst [vmem:[%s431 + $0x78] sm:$0xff] %v1005
        %1038 = vst [vmem:[%s431 + $0x80] sm:$0xff] %v1006
        %1039 = vst [vmem:[%s431 + $0x88] sm:$0xff] %v1007
        %1040 = vst [vmem:[%s431 + $0x90] sm:$0xff] %v1008
        %1041 = vst [vmem:[%s431 + $0x98] sm:$0xff] %v1009
        %1042 = vst [vmem:[%s431 + $0xa0] sm:$0xff] %v1010
        %1043 = vst [vmem:[%s431 + $0xa8] sm:$0xff] %v1011
        %1044 = vst [vmem:[%s431 + $0xb0] sm:$0xff] %v1012
        %1045 = vst [vmem:[%s431 + $0xb8] sm:$0xff] %v1013
        %1046 = vst [vmem:[%s431 + $0xc0] sm:$0xff] %v1014
        %1047 = vst [vmem:[%s431 + $0xc8] sm:$0xff] %v1015
        %1048 = vst [vmem:[%s431 + $0xd0] sm:$0xff] %v1016
        %1049 = vst [vmem:[%s431 + $0xd8] sm:$0xff] %v1017
        %1050 = vst [vmem:[%s431 + $0xe0] sm:$0xff] %v1018
        %1051 = vst [vmem:[%s431 + $0xe8] sm:$0xff] %v1019
        %1052 = vst [vmem:[%s431 + $0xf0] sm:$0xff] %v1020
        %1053 = vst [vmem:[%s431 + $0xf8] sm:$0xff] %v1021
      $region44: #{gcn2_forward.3} parent=35 // pred_fallthru
        _
      // Predicated region
      $region45: #{gcn2_forward.3} parent=35 // pred_check
        %p1054 = pneg %p433
      $region46: #{gcn2_forward.3} parent=35 // pred_check_branch
        %1056 = sbr.rel (%p1054) target = $region48
      $region47: #{gcn2_forward.3} parent=35 // pred_region
        %v1057 = vld [vmem:[%s424] sm:$0xff]
        %v1058 = vld [vmem:[%s424 + $0x8] sm:$0xff]
        %v1059 = vld [vmem:[%s424 + $0x10] sm:$0xff]
        %v1060 = vld [vmem:[%s424 + $0x18] sm:$0xff]
        %v1061 = vld [vmem:[%s424 + $0x20] sm:$0xff]
        %v1062 = vld [vmem:[%s424 + $0x28] sm:$0xff]
        %v1063 = vld [vmem:[%s424 + $0x30] sm:$0xff]
        %v1064 = vld [vmem:[%s424 + $0x38] sm:$0xff]
        %v1065 = vld [vmem:[%s424 + $0x40] sm:$0xff]
        %v1066 = vld [vmem:[%s424 + $0x48] sm:$0xff]
        %v1067 = vld [vmem:[%s424 + $0x50] sm:$0xff]
        %v1068 = vld [vmem:[%s424 + $0x58] sm:$0xff]
        %v1069 = vld [vmem:[%s424 + $0x60] sm:$0xff]
        %v1070 = vld [vmem:[%s424 + $0x68] sm:$0xff]
        %v1071 = vld [vmem:[%s424 + $0x70] sm:$0xff]
        %v1072 = vld [vmem:[%s424 + $0x78] sm:$0xff]
        %v1073 = vld [vmem:[%s418] sm:$0xff]
        %v1074 = vld [vmem:[%s418 + $0x8] sm:$0xff]
        %v1075 = vld [vmem:[%s418 + $0x10] sm:$0xff]
        %v1076 = vld [vmem:[%s418 + $0x18] sm:$0xff]
        %v1077 = vld [vmem:[%s418 + $0x20] sm:$0xff]
        %v1078 = vld [vmem:[%s418 + $0x28] sm:$0xff]
        %v1079 = vld [vmem:[%s418 + $0x30] sm:$0xff]
        %v1080 = vld [vmem:[%s418 + $0x38] sm:$0xff]
        %v1081 = vld [vmem:[%s418 + $0x40] sm:$0xff]
        %v1082 = vld [vmem:[%s418 + $0x48] sm:$0xff]
        %v1083 = vld [vmem:[%s418 + $0x50] sm:$0xff]
        %v1084 = vld [vmem:[%s418 + $0x58] sm:$0xff]
        %v1085 = vld [vmem:[%s418 + $0x60] sm:$0xff]
        %v1086 = vld [vmem:[%s418 + $0x68] sm:$0xff]
        %v1087 = vld [vmem:[%s418 + $0x70] sm:$0xff]
        %v1088 = vld [vmem:[%s418 + $0x78] sm:$0xff]
        %v1089 = vunpack.c.l.bf16 %v1073
        %v1090 = vunpack.c.h.bf16 %v1073
        %v1091 = vunpack.c.l.bf16 %v1074
        %v1092 = vunpack.c.h.bf16 %v1074
        %v1093 = vunpack.c.l.bf16 %v1075
        %v1094 = vunpack.c.h.bf16 %v1075
        %v1095 = vunpack.c.l.bf16 %v1076
        %v1096 = vunpack.c.h.bf16 %v1076
        %v1097 = vunpack.c.l.bf16 %v1077
        %v1098 = vunpack.c.h.bf16 %v1077
        %v1099 = vunpack.c.l.bf16 %v1078
        %v1100 = vunpack.c.h.bf16 %v1078
        %v1101 = vunpack.c.l.bf16 %v1079
        %v1102 = vunpack.c.h.bf16 %v1079
        %v1103 = vunpack.c.l.bf16 %v1080
        %v1104 = vunpack.c.h.bf16 %v1080
        %v1105 = vunpack.c.l.bf16 %v1081
        %v1106 = vunpack.c.h.bf16 %v1081
        %v1107 = vunpack.c.l.bf16 %v1082
        %v1108 = vunpack.c.h.bf16 %v1082
        %v1109 = vunpack.c.l.bf16 %v1083
        %v1110 = vunpack.c.h.bf16 %v1083
        %v1111 = vunpack.c.l.bf16 %v1084
        %v1112 = vunpack.c.h.bf16 %v1084
        %v1113 = vunpack.c.l.bf16 %v1085
        %v1114 = vunpack.c.h.bf16 %v1085
        %v1115 = vunpack.c.l.bf16 %v1086
        %v1116 = vunpack.c.h.bf16 %v1086
        %v1117 = vunpack.c.l.bf16 %v1087
        %v1118 = vunpack.c.h.bf16 %v1087
        %v1119 = vunpack.c.l.bf16 %v1088
        %v1120 = vunpack.c.h.bf16 %v1088
        %v1121 = vld [vmem:[%s431] sm:$0xff]
        %v1122 = vld [vmem:[%s431 + $0x10] sm:$0xff]
        %v1123 = vld [vmem:[%s431 + $0x20] sm:$0xff]
        %v1124 = vld [vmem:[%s431 + $0x30] sm:$0xff]
        %v1125 = vld [vmem:[%s431 + $0x40] sm:$0xff]
        %v1126 = vld [vmem:[%s431 + $0x50] sm:$0xff]
        %v1127 = vld [vmem:[%s431 + $0x60] sm:$0xff]
        %v1128 = vld [vmem:[%s431 + $0x70] sm:$0xff]
        %v1129 = vld [vmem:[%s431 + $0x80] sm:$0xff]
        %v1130 = vld [vmem:[%s431 + $0x90] sm:$0xff]
        %v1131 = vld [vmem:[%s431 + $0xa0] sm:$0xff]
        %v1132 = vld [vmem:[%s431 + $0xb0] sm:$0xff]
        %v1133 = vld [vmem:[%s431 + $0xc0] sm:$0xff]
        %v1134 = vld [vmem:[%s431 + $0xd0] sm:$0xff]
        %v1135 = vld [vmem:[%s431 + $0xe0] sm:$0xff]
        %v1136 = vld [vmem:[%s431 + $0xf0] sm:$0xff]
        %1138 = vset.pattern.permute.xlu0 0
        %1139 = vperm.xlu0 %1138, %v1057
        %v1140 = vpop.permute.xlu0 %1139
        %1143 = vset.pattern.permute.xlu0 0
        %1144 = vperm.xlu0 %1143, %v1058
        %v1145 = vpop.permute.xlu0 %1144
        %1148 = vset.pattern.permute.xlu0 0
        %1149 = vperm.xlu0 %1148, %v1059
        %v1150 = vpop.permute.xlu0 %1149
        %1153 = vset.pattern.permute.xlu0 0
        %1154 = vperm.xlu0 %1153, %v1060
        %v1155 = vpop.permute.xlu0 %1154
        %1158 = vset.pattern.permute.xlu0 0
        %1159 = vperm.xlu0 %1158, %v1061
        %v1160 = vpop.permute.xlu0 %1159
        %1163 = vset.pattern.permute.xlu0 0
        %1164 = vperm.xlu0 %1163, %v1062
        %v1165 = vpop.permute.xlu0 %1164
        %1168 = vset.pattern.permute.xlu0 0
        %1169 = vperm.xlu0 %1168, %v1063
        %v1170 = vpop.permute.xlu0 %1169
        %1173 = vset.pattern.permute.xlu0 0
        %1174 = vperm.xlu0 %1173, %v1064
        %v1175 = vpop.permute.xlu0 %1174
        %1178 = vset.pattern.permute.xlu0 0
        %1179 = vperm.xlu0 %1178, %v1065
        %v1180 = vpop.permute.xlu0 %1179
        %1183 = vset.pattern.permute.xlu0 0
        %1184 = vperm.xlu0 %1183, %v1066
        %v1185 = vpop.permute.xlu0 %1184
        %1188 = vset.pattern.permute.xlu0 0
        %1189 = vperm.xlu0 %1188, %v1067
        %v1190 = vpop.permute.xlu0 %1189
        %1193 = vset.pattern.permute.xlu0 0
        %1194 = vperm.xlu0 %1193, %v1068
        %v1195 = vpop.permute.xlu0 %1194
        %1198 = vset.pattern.permute.xlu0 0
        %1199 = vperm.xlu0 %1198, %v1069
        %v1200 = vpop.permute.xlu0 %1199
        %1203 = vset.pattern.permute.xlu0 0
        %1204 = vperm.xlu0 %1203, %v1070
        %v1205 = vpop.permute.xlu0 %1204
        %1208 = vset.pattern.permute.xlu0 0
        %1209 = vperm.xlu0 %1208, %v1071
        %v1210 = vpop.permute.xlu0 %1209
        %1213 = vset.pattern.permute.xlu0 0
        %1214 = vperm.xlu0 %1213, %v1072
        %v1215 = vpop.permute.xlu0 %1214
        %v1217 = vmul.f32 %v1140, %v1090
        %v1218 = vmul.f32 %v1145, %v1092
        %v1219 = vmul.f32 %v1150, %v1094
        %v1220 = vmul.f32 %v1155, %v1096
        %v1221 = vmul.f32 %v1160, %v1098
        %v1222 = vmul.f32 %v1165, %v1100
        %v1223 = vmul.f32 %v1170, %v1102
        %v1224 = vmul.f32 %v1175, %v1104
        %v1225 = vmul.f32 %v1180, %v1106
        %v1226 = vmul.f32 %v1185, %v1108
        %v1227 = vmul.f32 %v1190, %v1110
        %v1228 = vmul.f32 %v1195, %v1112
        %v1229 = vmul.f32 %v1200, %v1114
        %v1230 = vmul.f32 %v1205, %v1116
        %v1231 = vmul.f32 %v1210, %v1118
        %v1232 = vmul.f32 %v1215, %v1120
        %v1233 = vadd.f32 %v1121, %v1217
        %v1234 = vadd.f32 %v1122, %v1218
        %v1235 = vadd.f32 %v1123, %v1219
        %v1236 = vadd.f32 %v1124, %v1220
        %v1237 = vadd.f32 %v1125, %v1221
        %v1238 = vadd.f32 %v1126, %v1222
        %v1239 = vadd.f32 %v1127, %v1223
        %v1240 = vadd.f32 %v1128, %v1224
        %v1241 = vadd.f32 %v1129, %v1225
        %v1242 = vadd.f32 %v1130, %v1226
        %v1243 = vadd.f32 %v1131, %v1227
        %v1244 = vadd.f32 %v1132, %v1228
        %v1245 = vadd.f32 %v1133, %v1229
        %v1246 = vadd.f32 %v1134, %v1230
        %v1247 = vadd.f32 %v1135, %v1231
        %v1248 = vadd.f32 %v1136, %v1232
        %v1249 = vmax.f32 %v1233, 0.0
        %v1250 = vmax.f32 %v1234, 0.0
        %v1251 = vmax.f32 %v1235, 0.0
        %v1252 = vmax.f32 %v1236, 0.0
        %v1253 = vmax.f32 %v1237, 0.0
        %v1254 = vmax.f32 %v1238, 0.0
        %v1255 = vmax.f32 %v1239, 0.0
        %v1256 = vmax.f32 %v1240, 0.0
        %v1257 = vmax.f32 %v1241, 0.0
        %v1258 = vmax.f32 %v1242, 0.0
        %v1259 = vmax.f32 %v1243, 0.0
        %v1260 = vmax.f32 %v1244, 0.0
        %v1261 = vmax.f32 %v1245, 0.0
        %v1262 = vmax.f32 %v1246, 0.0
        %v1263 = vmax.f32 %v1247, 0.0
        %v1264 = vmax.f32 %v1248, 0.0
        %v1265 = vld [vmem:[%s431 + $0x8] sm:$0xff]
        %v1266 = vld [vmem:[%s431 + $0x18] sm:$0xff]
        %v1267 = vld [vmem:[%s431 + $0x28] sm:$0xff]
        %v1268 = vld [vmem:[%s431 + $0x38] sm:$0xff]
        %v1269 = vld [vmem:[%s431 + $0x48] sm:$0xff]
        %v1270 = vld [vmem:[%s431 + $0x58] sm:$0xff]
        %v1271 = vld [vmem:[%s431 + $0x68] sm:$0xff]
        %v1272 = vld [vmem:[%s431 + $0x78] sm:$0xff]
        %v1273 = vld [vmem:[%s431 + $0x88] sm:$0xff]
        %v1274 = vld [vmem:[%s431 + $0x98] sm:$0xff]
        %v1275 = vld [vmem:[%s431 + $0xa8] sm:$0xff]
        %v1276 = vld [vmem:[%s431 + $0xb8] sm:$0xff]
        %v1277 = vld [vmem:[%s431 + $0xc8] sm:$0xff]
        %v1278 = vld [vmem:[%s431 + $0xd8] sm:$0xff]
        %v1279 = vld [vmem:[%s431 + $0xe8] sm:$0xff]
        %v1280 = vld [vmem:[%s431 + $0xf8] sm:$0xff]
        %v1281 = vmul.f32 %v1140, %v1089
        %v1282 = vmul.f32 %v1145, %v1091
        %v1283 = vmul.f32 %v1150, %v1093
        %v1284 = vmul.f32 %v1155, %v1095
        %v1285 = vmul.f32 %v1160, %v1097
        %v1286 = vmul.f32 %v1165, %v1099
        %v1287 = vmul.f32 %v1170, %v1101
        %v1288 = vmul.f32 %v1175, %v1103
        %v1289 = vmul.f32 %v1180, %v1105
        %v1290 = vmul.f32 %v1185, %v1107
        %v1291 = vmul.f32 %v1190, %v1109
        %v1292 = vmul.f32 %v1195, %v1111
        %v1293 = vmul.f32 %v1200, %v1113
        %v1294 = vmul.f32 %v1205, %v1115
        %v1295 = vmul.f32 %v1210, %v1117
        %v1296 = vmul.f32 %v1215, %v1119
        %v1297 = vadd.f32 %v1265, %v1281
        %v1298 = vadd.f32 %v1266, %v1282
        %v1299 = vadd.f32 %v1267, %v1283
        %v1300 = vadd.f32 %v1268, %v1284
        %v1301 = vadd.f32 %v1269, %v1285
        %v1302 = vadd.f32 %v1270, %v1286
        %v1303 = vadd.f32 %v1271, %v1287
        %v1304 = vadd.f32 %v1272, %v1288
        %v1305 = vadd.f32 %v1273, %v1289
        %v1306 = vadd.f32 %v1274, %v1290
        %v1307 = vadd.f32 %v1275, %v1291
        %v1308 = vadd.f32 %v1276, %v1292
        %v1309 = vadd.f32 %v1277, %v1293
        %v1310 = vadd.f32 %v1278, %v1294
        %v1311 = vadd.f32 %v1279, %v1295
        %v1312 = vadd.f32 %v1280, %v1296
        %v1313 = vmax.f32 %v1297, 0.0
        %v1314 = vmax.f32 %v1298, 0.0
        %v1315 = vmax.f32 %v1299, 0.0
        %v1316 = vmax.f32 %v1300, 0.0
        %v1317 = vmax.f32 %v1301, 0.0
        %v1318 = vmax.f32 %v1302, 0.0
        %v1319 = vmax.f32 %v1303, 0.0
        %v1320 = vmax.f32 %v1304, 0.0
        %v1321 = vmax.f32 %v1305, 0.0
        %v1322 = vmax.f32 %v1306, 0.0
        %v1323 = vmax.f32 %v1307, 0.0
        %v1324 = vmax.f32 %v1308, 0.0
        %v1325 = vmax.f32 %v1309, 0.0
        %v1326 = vmax.f32 %v1310, 0.0
        %v1327 = vmax.f32 %v1311, 0.0
        %v1328 = vmax.f32 %v1312, 0.0
        %1329 = vst [vmem:[%s431] sm:$0xff] %v1249
        %1330 = vst [vmem:[%s431 + $0x10] sm:$0xff] %v1250
        %1331 = vst [vmem:[%s431 + $0x20] sm:$0xff] %v1251
        %1332 = vst [vmem:[%s431 + $0x30] sm:$0xff] %v1252
        %1333 = vst [vmem:[%s431 + $0x40] sm:$0xff] %v1253
        %1334 = vst [vmem:[%s431 + $0x50] sm:$0xff] %v1254
        %1335 = vst [vmem:[%s431 + $0x60] sm:$0xff] %v1255
        %1336 = vst [vmem:[%s431 + $0x70] sm:$0xff] %v1256
        %1337 = vst [vmem:[%s431 + $0x80] sm:$0xff] %v1257
        %1338 = vst [vmem:[%s431 + $0x90] sm:$0xff] %v1258
        %1339 = vst [vmem:[%s431 + $0xa0] sm:$0xff] %v1259
        %1340 = vst [vmem:[%s431 + $0xb0] sm:$0xff] %v1260
        %1341 = vst [vmem:[%s431 + $0xc0] sm:$0xff] %v1261
        %1342 = vst [vmem:[%s431 + $0xd0] sm:$0xff] %v1262
        %1343 = vst [vmem:[%s431 + $0xe0] sm:$0xff] %v1263
        %1344 = vst [vmem:[%s431 + $0xf0] sm:$0xff] %v1264
        %1345 = vst [vmem:[%s431 + $0x8] sm:$0xff] %v1313
        %1346 = vst [vmem:[%s431 + $0x18] sm:$0xff] %v1314
        %1347 = vst [vmem:[%s431 + $0x28] sm:$0xff] %v1315
        %1348 = vst [vmem:[%s431 + $0x38] sm:$0xff] %v1316
        %1349 = vst [vmem:[%s431 + $0x48] sm:$0xff] %v1317
        %1350 = vst [vmem:[%s431 + $0x58] sm:$0xff] %v1318
        %1351 = vst [vmem:[%s431 + $0x68] sm:$0xff] %v1319
        %1352 = vst [vmem:[%s431 + $0x78] sm:$0xff] %v1320
        %1353 = vst [vmem:[%s431 + $0x88] sm:$0xff] %v1321
        %1354 = vst [vmem:[%s431 + $0x98] sm:$0xff] %v1322
        %1355 = vst [vmem:[%s431 + $0xa8] sm:$0xff] %v1323
        %1356 = vst [vmem:[%s431 + $0xb8] sm:$0xff] %v1324
        %1357 = vst [vmem:[%s431 + $0xc8] sm:$0xff] %v1325
        %1358 = vst [vmem:[%s431 + $0xd8] sm:$0xff] %v1326
        %1359 = vst [vmem:[%s431 + $0xe8] sm:$0xff] %v1327
        %1360 = vst [vmem:[%s431 + $0xf8] sm:$0xff] %v1328
      $region48: #{gcn2_forward.3} parent=35 // pred_fallthru
        _
      %s1361 = smul.u32 16, %s34
      %p1362 = scmp.lt.s32.totalorder %s1361, 31
      %s1363 = scalar_select %p1362, %s1361, 31
      %s1364 = smul.addr %s1363, 2
      %s1365 = smul.addr %s1364, 8
      %s1366 = scalar_lea.vmem %s6, %s1365
      // Predicated region
      $region49: #{gcn2_forward.3} parent=35 // pred_check
        %p1367 = pneg %p198
      $region50: #{gcn2_forward.3} parent=35 // pred_check_branch
        %1369 = sbr.rel (%p1367) target = $region52
      $region51: #{gcn2_forward.3} parent=35 // pred_region
        %s1370 = smul.u32 16, %s34
      $region52: #{gcn2_forward.3} parent=35 // pred_fallthru
        _
    $region36: #{gcn2_forward.3} parent=5 // pred_fallthru
      _
    %p1371 = scmp.le.s32.totalorder 2, %s25
    // Predicated region
    $region53: #{gcn2_forward.3} parent=5 // pred_check
      %p1372 = pneg %p1371
    $region54: #{gcn2_forward.3} parent=5 // pred_check_branch
      %1374 = sbr.rel (%p1372) target = $region56
    $region55: #{gcn2_forward.3} parent=5 // pred_region
      %s1375 = ssub.s32 %s25, 2
      // Predicated region
      $region57: #{gcn2_forward.3} parent=55 // pred_check
        %p1376 = pneg %p204
      $region58: #{gcn2_forward.3} parent=55 // pred_check_branch
        %1378 = sbr.rel (%p1376) target = $region60
      $region59: #{gcn2_forward.3} parent=55 // pred_region
        %s1379 = smul.u32 16, %s36
        %p1380 = scmp.lt.s32.totalorder %s1379, 31
        %s1381 = scalar_select %p1380, %s1379, 31
        %s1382 = smul.addr %s1381, 2
        %s1383 = smul.addr %s1382, 8
        %s1384 = scalar_lea.vmem %s6, %s1383
      $region60: #{gcn2_forward.3} parent=55 // pred_fallthru
        _
    $region56: #{gcn2_forward.3} parent=5 // pred_fallthru
      _
  $region6: #{gcn2_forward.3} parent=0 // loop_footer
    %s29 = sadd.s32 1, %s25
  $region7: #{gcn2_forward.3} parent=0 // loop_footer_branch
    %24 = sbr.rel target = $region3
  $region8: #{gcn2_forward.3} parent=0 // loop_exit
    _

</llo_original>
